<compile_context>
chip_gen: v7x
topology: tpu7x:2x2x1
jax: 0.10.0
libtpu: 0.0.40
codegen_flags: <defaults>
</compile_context>

<pallas_src>
import jax
import jax.numpy as jnp
from jax import lax
from jax.experimental import pallas as pl
from jax.experimental.pallas import tpu as pltpu

LN_EPS = 1e-5  # nn.LayerNorm default
LANE = 128


def _round_up(v, m):
    return (v + m - 1) // m * m


def _pick_block_batch(batch):
    """Largest multiple-of-8 divisor of batch (capped) usable as a batch tile."""
    for tb in (1024, 512, 256, 128, 64, 32, 16, 8):
        if tb <= batch and batch % tb == 0:
            return tb
    return batch  # fallback: full-array block (always legal)


def make_mlp_kernel(seg_offsets, seg_widths, compute_dtype):
    """Builds the fused 5-layer MLP kernel.

    seg_offsets / seg_widths: static column (lane) offsets / widths of each
    layer's segment inside the packed small-param array `pk`
    (row 0 = bias, row 1 = LN gamma, row 2 = LN beta).
    """

    def kernel(x_ref, w1_ref, w2_ref, w3_ref, w4_ref, w5_ref, pk_ref, o_ref):
        w_refs = (w1_ref, w2_ref, w3_ref, w4_ref, w5_ref)
        h = x_ref[...]  # bf16 [TB, Din]

        # 4 x (Linear -> LayerNorm -> ReLU)
        for li in range(4):
            off, width = seg_offsets[li], seg_widths[li]
            b = pk_ref[0:1, off:off + width]    # [1, width] f32
            g = pk_ref[1:2, off:off + width]
            be = pk_ref[2:3, off:off + width]

            z = jnp.dot(h.astype(compute_dtype), w_refs[li][...],
                        preferred_element_type=jnp.float32) + b
            mu = jnp.mean(z, axis=-1, keepdims=True)
            var = jnp.mean(z * z, axis=-1, keepdims=True) - mu * mu
            var = jnp.maximum(var, 0.0)
            zn = (z - mu) * lax.rsqrt(var + LN_EPS)
            h = jnp.maximum(zn * g + be, 0.0)   # f32

        # final Linear (output dim zero-padded to a lane-dense width)
        off, width = seg_offsets[4], seg_widths[4]
        b5 = pk_ref[0:1, off:off + width]
        out = jnp.dot(h.astype(compute_dtype), w5_ref[...],
                      preferred_element_type=jnp.float32) + b5
        o_ref[...] = out.astype(o_ref.dtype)

    return kernel


def init_params(key, input_dim, output_dim):
    """Deterministic init mimicking nn.Linear default (uniform +-1/sqrt(fan_in))
    and nn.LayerNorm default (gamma=1, beta=0). Weights stored as [din, dout]."""
    dims = [
        (input_dim, input_dim * 4),
        (input_dim * 4, input_dim * 8),
        (input_dim * 8, output_dim * 8),
        (output_dim * 8, output_dim * 4),
        (output_dim * 4, output_dim),
    ]
    params = []
    for (din, dout) in dims:
        key, kw, kb = jax.random.split(key, 3)
        bound = 1.0 / jnp.sqrt(jnp.float32(din))
        w = jax.random.uniform(kw, (din, dout), jnp.float32, -bound, bound)
        b = jax.random.uniform(kb, (1, dout), jnp.float32, -bound, bound)
        params.append((w, b))
    ln_params = []
    for (_, dout) in dims[:4]:
        ln_params.append((jnp.ones((1, dout), jnp.float32),
                          jnp.zeros((1, dout), jnp.float32)))
    return params, ln_params


def mlp_regressor_forward(x, params, ln_params, *, block_batch=None,
                          compute_dtype=jnp.bfloat16):
    batch, input_dim = x.shape
    output_dim = params[4][0].shape[1]
    out_pad = _round_up(output_dim, LANE)

    # --- stage weights: bf16, last layer zero-padded to lane-dense width -----
    ws = [p[0].astype(compute_dtype) for p in params[:4]]
    w5 = jnp.zeros((params[4][0].shape[0], out_pad), compute_dtype)
    w5 = w5.at[:, :output_dim].set(params[4][0].astype(compute_dtype))
    ws.append(w5)

    # --- pack all biases / LN gammas / betas into one (3, W) f32 array -------
    widths = [p[0].shape[1] for p in params[:4]] + [out_pad]
    offsets, cur = [], 0
    for w in widths:
        offsets.append(cur)
        cur = _round_up(cur + w, LANE)
    pk_width = _round_up(cur, LANE)
    pk = jnp.zeros((3, pk_width), jnp.float32)
    for li in range(4):
        off, w = offsets[li], widths[li]
        pk = pk.at[0, off:off + w].set(params[li][1].reshape(-1))
        pk = pk.at[1, off:off + w].set(ln_params[li][0].reshape(-1))
        pk = pk.at[2, off:off + w].set(ln_params[li][1].reshape(-1))
    pk = pk.at[0, offsets[4]:offsets[4] + output_dim].set(params[4][1].reshape(-1))

    # --- batch tiling ---------------------------------------------------------
    tb = block_batch if block_batch is not None else _pick_block_batch(batch)
    assert batch % tb == 0 and (tb % 8 == 0 or tb == batch), "bad batch tile"
    grid = (batch // tb,)

    x_lp = x.astype(compute_dtype)

    def full_spec(a):
        return pl.BlockSpec(a.shape, lambda i, _nd=a.ndim: (0,) * _nd)

    in_specs = [pl.BlockSpec((tb, input_dim), lambda i: (i, 0))]
    in_specs += [full_spec(w) for w in ws]
    in_specs += [full_spec(pk)]
    out_spec = pl.BlockSpec((tb, out_pad), lambda i: (i, 0))

    kernel = make_mlp_kernel(tuple(offsets), tuple(widths), compute_dtype)

    out_padded = pl.pallas_call(
        kernel,
        out_shape=jax.ShapeDtypeStruct((batch, out_pad), jnp.float32),
        grid=grid,
        in_specs=in_specs,
        out_specs=out_spec,
        compiler_params=pltpu.CompilerParams(
            dimension_semantics=("parallel",),
            vmem_limit_bytes=32 * 1024 * 1024,
        ),
    )(x_lp, *ws, pk)

    return out_padded[:, :output_dim]


def mlp_regressor_reference(x, params, ln_params, compute_dtype=jnp.float32):
    """Pure-JAX reference. compute_dtype controls matmul-input precision so the
    same function serves as both the exact f32 reference and a bf16-matched one."""
    h = x.astype(jnp.float32)
    for i in range(4):
        w, b = params[i]
        g, be = ln_params[i]
        h = jnp.dot(h.astype(compute_dtype), w.astype(compute_dtype),
                    preferred_element_type=jnp.float32) + b
        mu = jnp.mean(h, axis=-1, keepdims=True)
        var = jnp.mean((h - mu) ** 2, axis=-1, keepdims=True)
        h = (h - mu) / jnp.sqrt(var + LN_EPS)
        h = jnp.maximum(h * g + be, 0.0)
    w, b = params[4]
    return jnp.dot(h.astype(compute_dtype), w.astype(compute_dtype),
                   preferred_element_type=jnp.float32) + b


if __name__ == "__main__":
    input_dim = 32
    output_dim = 16
    batch = 128          # small, but enough rows to exercise the batch grid

    key = jax.random.PRNGKey(0)
    key, kx = jax.random.split(key)
    x = jax.random.normal(kx, (batch, input_dim), jnp.float32)
    params, ln_params = init_params(key, input_dim, output_dim)

    out = mlp_regressor_forward(x, params, ln_params, block_batch=64)
    out = jax.block_until_ready(out)
    assert out.shape == (batch, output_dim)

    # precision-matched reference (bf16 matmul inputs, f32 accumulation)
    ref_bf16 = mlp_regressor_reference(x, params, ln_params, jnp.bfloat16)
    assert jnp.allclose(out, ref_bf16, atol=1e-3, rtol=1e-3), \
        "mismatch vs bf16-matched reference"

    # loose semantic check against the full-f32 PyTorch-equivalent math
    ref_f32 = mlp_regressor_reference(x, params, ln_params, jnp.float32)
    assert jnp.allclose(out, ref_f32, atol=5e-2, rtol=5e-2), \
        "mismatch vs f32 reference"

    print("KERNEL_OK")
</pallas_src>

<mosaic_0001>
module attributes {stable_mosaic.version = 11 : i64} {
  func.func @kernel(%arg0: i32, %arg1: memref<64x32xbf16, #tpu.memory_space<vmem>>, %arg2: memref<32x128xbf16, #tpu.memory_space<vmem>>, %arg3: memref<128x256xbf16, #tpu.memory_space<vmem>>, %arg4: memref<256x128xbf16, #tpu.memory_space<vmem>>, %arg5: memref<128x64xbf16, #tpu.memory_space<vmem>>, %arg6: memref<64x128xbf16, #tpu.memory_space<vmem>>, %arg7: memref<3x768xf32, #tpu.memory_space<vmem>>, %arg8: memref<64x128xf32, #tpu.memory_space<vmem>>) attributes {dimension_semantics = [#tpu.dimension_semantics<parallel>], iteration_bounds = array<i64: 2>, scalar_prefetch = 0 : i64, scratch_operands = 0 : i64, tpu.core_type = #tpu.core_type<tc>, window_params = [{transform_indices = @transform_0, window_bounds = array<i64: 64, 32>}, {pipeline_mode = #tpu.pipeline_mode<synchronous>, transform_indices = @transform_1, window_bounds = array<i64: 32, 128>}, {pipeline_mode = #tpu.pipeline_mode<synchronous>, transform_indices = @transform_2, window_bounds = array<i64: 128, 256>}, {pipeline_mode = #tpu.pipeline_mode<synchronous>, transform_indices = @transform_3, window_bounds = array<i64: 256, 128>}, {pipeline_mode = #tpu.pipeline_mode<synchronous>, transform_indices = @transform_4, window_bounds = array<i64: 128, 64>}, {pipeline_mode = #tpu.pipeline_mode<synchronous>, transform_indices = @transform_5, window_bounds = array<i64: 64, 128>}, {pipeline_mode = #tpu.pipeline_mode<synchronous>, transform_indices = @transform_6, window_bounds = array<i64: 3, 768>}, {transform_indices = @transform_7, window_bounds = array<i64: 64, 128>}]} {
    %c0 = arith.constant 0 : index
    %c0_0 = arith.constant 0 : index
    %0 = vector.load %arg1[%c0, %c0_0] : memref<64x32xbf16, #tpu.memory_space<vmem>>, vector<64x32xbf16>
    %c0_1 = arith.constant 0 : index
    %c0_2 = arith.constant 0 : index
    %1 = vector.load %arg7[%c0_1, %c0_2] : memref<3x768xf32, #tpu.memory_space<vmem>>, vector<1x128xf32>
    %c1 = arith.constant 1 : index
    %c0_3 = arith.constant 0 : index
    %2 = vector.load %arg7[%c1, %c0_3] : memref<3x768xf32, #tpu.memory_space<vmem>>, vector<1x128xf32>
    %c2 = arith.constant 2 : index
    %c0_4 = arith.constant 0 : index
    %3 = vector.load %arg7[%c2, %c0_4] : memref<3x768xf32, #tpu.memory_space<vmem>>, vector<1x128xf32>
    %c0_5 = arith.constant 0 : index
    %c0_6 = arith.constant 0 : index
    %4 = vector.load %arg2[%c0_5, %c0_6] : memref<32x128xbf16, #tpu.memory_space<vmem>>, vector<32x128xbf16>
    %cst = arith.constant dense<0.000000e+00> : vector<64x128xf32>
    %5 = tpu.matmul %0, %4, %cst {dimension_numbers = #tpu.dot_dimension_numbers<[1], [0], [0], [1], [0, 0, 1, 1], [], []>} : vector<64x32xbf16>, vector<32x128xbf16>, vector<64x128xf32> -> vector<64x128xf32>
    %6 = vector.broadcast %1 : vector<1x128xf32> to vector<64x128xf32>
    %7 = arith.addf %5, %6 : vector<64x128xf32>
    %cst_7 = arith.constant dense<0.000000e+00> : vector<64xf32>
    %8 = vector.multi_reduction <add>, %7, %cst_7 [1] : vector<64x128xf32> to vector<64xf32>
    %9 = vector.shape_cast %8 : vector<64xf32> to vector<64x1xf32>
    %cst_8 = arith.constant 1.280000e+02 : f32
    %10 = vector.broadcast %cst_8 : f32 to vector<64x1xf32>
    %11 = arith.divf %9, %10 : vector<64x1xf32>
    %12 = arith.mulf %7, %7 : vector<64x128xf32>
    %cst_9 = arith.constant dense<0.000000e+00> : vector<64xf32>
    %13 = vector.multi_reduction <add>, %12, %cst_9 [1] : vector<64x128xf32> to vector<64xf32>
    %14 = vector.shape_cast %13 : vector<64xf32> to vector<64x1xf32>
    %cst_10 = arith.constant 1.280000e+02 : f32
    %15 = vector.broadcast %cst_10 : f32 to vector<64x1xf32>
    %16 = arith.divf %14, %15 : vector<64x1xf32>
    %17 = arith.mulf %11, %11 : vector<64x1xf32>
    %18 = arith.subf %16, %17 : vector<64x1xf32>
    %cst_11 = arith.constant 0.000000e+00 : f32
    %19 = vector.broadcast %cst_11 : f32 to vector<64x1xf32>
    %20 = arith.maximumf %18, %19 : vector<64x1xf32>
    %21 = vector.broadcast %11 : vector<64x1xf32> to vector<64x128xf32>
    %22 = arith.subf %7, %21 : vector<64x128xf32>
    %cst_12 = arith.constant 9.99999974E-6 : f32
    %23 = vector.broadcast %cst_12 : f32 to vector<64x1xf32>
    %24 = arith.addf %20, %23 : vector<64x1xf32>
    %25 = math.rsqrt %24 : vector<64x1xf32>
    %26 = vector.broadcast %25 : vector<64x1xf32> to vector<64x128xf32>
    %27 = arith.mulf %22, %26 : vector<64x128xf32>
    %28 = vector.broadcast %2 : vector<1x128xf32> to vector<64x128xf32>
    %29 = arith.mulf %27, %28 : vector<64x128xf32>
    %30 = vector.broadcast %3 : vector<1x128xf32> to vector<64x128xf32>
    %31 = arith.addf %29, %30 : vector<64x128xf32>
    %cst_13 = arith.constant 0.000000e+00 : f32
    %32 = vector.broadcast %cst_13 : f32 to vector<64x128xf32>
    %33 = arith.maximumf %31, %32 : vector<64x128xf32>
    %c0_14 = arith.constant 0 : index
    %c128 = arith.constant 128 : index
    %34 = vector.load %arg7[%c0_14, %c128] : memref<3x768xf32, #tpu.memory_space<vmem>>, vector<1x256xf32>
    %c1_15 = arith.constant 1 : index
    %c128_16 = arith.constant 128 : index
    %35 = vector.load %arg7[%c1_15, %c128_16] : memref<3x768xf32, #tpu.memory_space<vmem>>, vector<1x256xf32>
    %c2_17 = arith.constant 2 : index
    %c128_18 = arith.constant 128 : index
    %36 = vector.load %arg7[%c2_17, %c128_18] : memref<3x768xf32, #tpu.memory_space<vmem>>, vector<1x256xf32>
    %37 = arith.truncf %33 : vector<64x128xf32> to vector<64x128xbf16>
    %c0_19 = arith.constant 0 : index
    %c0_20 = arith.constant 0 : index
    %38 = vector.load %arg3[%c0_19, %c0_20] : memref<128x256xbf16, #tpu.memory_space<vmem>>, vector<128x256xbf16>
    %cst_21 = arith.constant dense<0.000000e+00> : vector<64x256xf32>
    %39 = tpu.matmul %37, %38, %cst_21 {dimension_numbers = #tpu.dot_dimension_numbers<[1], [0], [0], [1], [0, 0, 1, 1], [], []>} : vector<64x128xbf16>, vector<128x256xbf16>, vector<64x256xf32> -> vector<64x256xf32>
    %40 = vector.broadcast %34 : vector<1x256xf32> to vector<64x256xf32>
    %41 = arith.addf %39, %40 : vector<64x256xf32>
    %cst_22 = arith.constant dense<0.000000e+00> : vector<64xf32>
    %42 = vector.multi_reduction <add>, %41, %cst_22 [1] : vector<64x256xf32> to vector<64xf32>
    %43 = vector.shape_cast %42 : vector<64xf32> to vector<64x1xf32>
    %cst_23 = arith.constant 2.560000e+02 : f32
    %44 = vector.broadcast %cst_23 : f32 to vector<64x1xf32>
    %45 = arith.divf %43, %44 : vector<64x1xf32>
    %46 = arith.mulf %41, %41 : vector<64x256xf32>
    %cst_24 = arith.constant dense<0.000000e+00> : vector<64xf32>
    %47 = vector.multi_reduction <add>, %46, %cst_24 [1] : vector<64x256xf32> to vector<64xf32>
    %48 = vector.shape_cast %47 : vector<64xf32> to vector<64x1xf32>
    %cst_25 = arith.constant 2.560000e+02 : f32
    %49 = vector.broadcast %cst_25 : f32 to vector<64x1xf32>
    %50 = arith.divf %48, %49 : vector<64x1xf32>
    %51 = arith.mulf %45, %45 : vector<64x1xf32>
    %52 = arith.subf %50, %51 : vector<64x1xf32>
    %cst_26 = arith.constant 0.000000e+00 : f32
    %53 = vector.broadcast %cst_26 : f32 to vector<64x1xf32>
    %54 = arith.maximumf %52, %53 : vector<64x1xf32>
    %55 = vector.broadcast %45 : vector<64x1xf32> to vector<64x256xf32>
    %56 = arith.subf %41, %55 : vector<64x256xf32>
    %cst_27 = arith.constant 9.99999974E-6 : f32
    %57 = vector.broadcast %cst_27 : f32 to vector<64x1xf32>
    %58 = arith.addf %54, %57 : vector<64x1xf32>
    %59 = math.rsqrt %58 : vector<64x1xf32>
    %60 = vector.broadcast %59 : vector<64x1xf32> to vector<64x256xf32>
    %61 = arith.mulf %56, %60 : vector<64x256xf32>
    %62 = vector.broadcast %35 : vector<1x256xf32> to vector<64x256xf32>
    %63 = arith.mulf %61, %62 : vector<64x256xf32>
    %64 = vector.broadcast %36 : vector<1x256xf32> to vector<64x256xf32>
    %65 = arith.addf %63, %64 : vector<64x256xf32>
    %cst_28 = arith.constant 0.000000e+00 : f32
    %66 = vector.broadcast %cst_28 : f32 to vector<64x256xf32>
    %67 = arith.maximumf %65, %66 : vector<64x256xf32>
    %c0_29 = arith.constant 0 : index
    %c384 = arith.constant 384 : index
    %68 = vector.load %arg7[%c0_29, %c384] : memref<3x768xf32, #tpu.memory_space<vmem>>, vector<1x128xf32>
    %c1_30 = arith.constant 1 : index
    %c384_31 = arith.constant 384 : index
    %69 = vector.load %arg7[%c1_30, %c384_31] : memref<3x768xf32, #tpu.memory_space<vmem>>, vector<1x128xf32>
    %c2_32 = arith.constant 2 : index
    %c384_33 = arith.constant 384 : index
    %70 = vector.load %arg7[%c2_32, %c384_33] : memref<3x768xf32, #tpu.memory_space<vmem>>, vector<1x128xf32>
    %71 = arith.truncf %67 : vector<64x256xf32> to vector<64x256xbf16>
    %c0_34 = arith.constant 0 : index
    %c0_35 = arith.constant 0 : index
    %72 = vector.load %arg4[%c0_34, %c0_35] : memref<256x128xbf16, #tpu.memory_space<vmem>>, vector<256x128xbf16>
    %cst_36 = arith.constant dense<0.000000e+00> : vector<64x128xf32>
    %73 = tpu.matmul %71, %72, %cst_36 {dimension_numbers = #tpu.dot_dimension_numbers<[1], [0], [0], [1], [0, 0, 1, 1], [], []>} : vector<64x256xbf16>, vector<256x128xbf16>, vector<64x128xf32> -> vector<64x128xf32>
    %74 = vector.broadcast %68 : vector<1x128xf32> to vector<64x128xf32>
    %75 = arith.addf %73, %74 : vector<64x128xf32>
    %cst_37 = arith.constant dense<0.000000e+00> : vector<64xf32>
    %76 = vector.multi_reduction <add>, %75, %cst_37 [1] : vector<64x128xf32> to vector<64xf32>
    %77 = vector.shape_cast %76 : vector<64xf32> to vector<64x1xf32>
    %cst_38 = arith.constant 1.280000e+02 : f32
    %78 = vector.broadcast %cst_38 : f32 to vector<64x1xf32>
    %79 = arith.divf %77, %78 : vector<64x1xf32>
    %80 = arith.mulf %75, %75 : vector<64x128xf32>
    %cst_39 = arith.constant dense<0.000000e+00> : vector<64xf32>
    %81 = vector.multi_reduction <add>, %80, %cst_39 [1] : vector<64x128xf32> to vector<64xf32>
    %82 = vector.shape_cast %81 : vector<64xf32> to vector<64x1xf32>
    %cst_40 = arith.constant 1.280000e+02 : f32
    %83 = vector.broadcast %cst_40 : f32 to vector<64x1xf32>
    %84 = arith.divf %82, %83 : vector<64x1xf32>
    %85 = arith.mulf %79, %79 : vector<64x1xf32>
    %86 = arith.subf %84, %85 : vector<64x1xf32>
    %cst_41 = arith.constant 0.000000e+00 : f32
    %87 = vector.broadcast %cst_41 : f32 to vector<64x1xf32>
    %88 = arith.maximumf %86, %87 : vector<64x1xf32>
    %89 = vector.broadcast %79 : vector<64x1xf32> to vector<64x128xf32>
    %90 = arith.subf %75, %89 : vector<64x128xf32>
    %cst_42 = arith.constant 9.99999974E-6 : f32
    %91 = vector.broadcast %cst_42 : f32 to vector<64x1xf32>
    %92 = arith.addf %88, %91 : vector<64x1xf32>
    %93 = math.rsqrt %92 : vector<64x1xf32>
    %94 = vector.broadcast %93 : vector<64x1xf32> to vector<64x128xf32>
    %95 = arith.mulf %90, %94 : vector<64x128xf32>
    %96 = vector.broadcast %69 : vector<1x128xf32> to vector<64x128xf32>
    %97 = arith.mulf %95, %96 : vector<64x128xf32>
    %98 = vector.broadcast %70 : vector<1x128xf32> to vector<64x128xf32>
    %99 = arith.addf %97, %98 : vector<64x128xf32>
    %cst_43 = arith.constant 0.000000e+00 : f32
    %100 = vector.broadcast %cst_43 : f32 to vector<64x128xf32>
    %101 = arith.maximumf %99, %100 : vector<64x128xf32>
    %c0_44 = arith.constant 0 : index
    %c512 = arith.constant 512 : index
    %102 = vector.load %arg7[%c0_44, %c512] : memref<3x768xf32, #tpu.memory_space<vmem>>, vector<1x64xf32>
    %c1_45 = arith.constant 1 : index
    %c512_46 = arith.constant 512 : index
    %103 = vector.load %arg7[%c1_45, %c512_46] : memref<3x768xf32, #tpu.memory_space<vmem>>, vector<1x64xf32>
    %c2_47 = arith.constant 2 : index
    %c512_48 = arith.constant 512 : index
    %104 = vector.load %arg7[%c2_47, %c512_48] : memref<3x768xf32, #tpu.memory_space<vmem>>, vector<1x64xf32>
    %105 = arith.truncf %101 : vector<64x128xf32> to vector<64x128xbf16>
    %c0_49 = arith.constant 0 : index
    %c0_50 = arith.constant 0 : index
    %106 = vector.load %arg5[%c0_49, %c0_50] : memref<128x64xbf16, #tpu.memory_space<vmem>>, vector<128x64xbf16>
    %cst_51 = arith.constant dense<0.000000e+00> : vector<64x64xf32>
    %107 = tpu.matmul %105, %106, %cst_51 {dimension_numbers = #tpu.dot_dimension_numbers<[1], [0], [0], [1], [0, 0, 1, 1], [], []>} : vector<64x128xbf16>, vector<128x64xbf16>, vector<64x64xf32> -> vector<64x64xf32>
    %108 = vector.broadcast %102 : vector<1x64xf32> to vector<64x64xf32>
    %109 = arith.addf %107, %108 : vector<64x64xf32>
    %cst_52 = arith.constant dense<0.000000e+00> : vector<64xf32>
    %110 = vector.multi_reduction <add>, %109, %cst_52 [1] : vector<64x64xf32> to vector<64xf32>
    %111 = vector.shape_cast %110 : vector<64xf32> to vector<64x1xf32>
    %cst_53 = arith.constant 6.400000e+01 : f32
    %112 = vector.broadcast %cst_53 : f32 to vector<64x1xf32>
    %113 = arith.divf %111, %112 : vector<64x1xf32>
    %114 = arith.mulf %109, %109 : vector<64x64xf32>
    %cst_54 = arith.constant dense<0.000000e+00> : vector<64xf32>
    %115 = vector.multi_reduction <add>, %114, %cst_54 [1] : vector<64x64xf32> to vector<64xf32>
    %116 = vector.shape_cast %115 : vector<64xf32> to vector<64x1xf32>
    %cst_55 = arith.constant 6.400000e+01 : f32
    %117 = vector.broadcast %cst_55 : f32 to vector<64x1xf32>
    %118 = arith.divf %116, %117 : vector<64x1xf32>
    %119 = arith.mulf %113, %113 : vector<64x1xf32>
    %120 = arith.subf %118, %119 : vector<64x1xf32>
    %cst_56 = arith.constant 0.000000e+00 : f32
    %121 = vector.broadcast %cst_56 : f32 to vector<64x1xf32>
    %122 = arith.maximumf %120, %121 : vector<64x1xf32>
    %123 = vector.broadcast %113 : vector<64x1xf32> to vector<64x64xf32>
    %124 = arith.subf %109, %123 : vector<64x64xf32>
    %cst_57 = arith.constant 9.99999974E-6 : f32
    %125 = vector.broadcast %cst_57 : f32 to vector<64x1xf32>
    %126 = arith.addf %122, %125 : vector<64x1xf32>
    %127 = math.rsqrt %126 : vector<64x1xf32>
    %128 = vector.broadcast %127 : vector<64x1xf32> to vector<64x64xf32>
    %129 = arith.mulf %124, %128 : vector<64x64xf32>
    %130 = vector.broadcast %103 : vector<1x64xf32> to vector<64x64xf32>
    %131 = arith.mulf %129, %130 : vector<64x64xf32>
    %132 = vector.broadcast %104 : vector<1x64xf32> to vector<64x64xf32>
    %133 = arith.addf %131, %132 : vector<64x64xf32>
    %cst_58 = arith.constant 0.000000e+00 : f32
    %134 = vector.broadcast %cst_58 : f32 to vector<64x64xf32>
    %135 = arith.maximumf %133, %134 : vector<64x64xf32>
    %c0_59 = arith.constant 0 : index
    %c640 = arith.constant 640 : index
    %136 = vector.load %arg7[%c0_59, %c640] : memref<3x768xf32, #tpu.memory_space<vmem>>, vector<1x128xf32>
    %137 = arith.truncf %135 : vector<64x64xf32> to vector<64x64xbf16>
    %c0_60 = arith.constant 0 : index
    %c0_61 = arith.constant 0 : index
    %138 = vector.load %arg6[%c0_60, %c0_61] : memref<64x128xbf16, #tpu.memory_space<vmem>>, vector<64x128xbf16>
    %cst_62 = arith.constant dense<0.000000e+00> : vector<64x128xf32>
    %139 = tpu.matmul %137, %138, %cst_62 {dimension_numbers = #tpu.dot_dimension_numbers<[1], [0], [0], [1], [0, 0, 1, 1], [], []>} : vector<64x64xbf16>, vector<64x128xbf16>, vector<64x128xf32> -> vector<64x128xf32>
    %140 = vector.broadcast %136 : vector<1x128xf32> to vector<64x128xf32>
    %141 = arith.addf %139, %140 : vector<64x128xf32>
    %c0_63 = arith.constant 0 : index
    %c0_64 = arith.constant 0 : index
    %142 = vector.load %arg8[%c0_63, %c0_64] : memref<64x128xf32, #tpu.memory_space<vmem>>, vector<64x128xf32>
    tpu.vector_store %arg8[%c0_63, %c0_64], %141 {strides = array<i32>} : memref<64x128xf32, #tpu.memory_space<vmem>>, vector<64x128xf32>,
    return
  }
  func.func @transform_0(%arg0: i32) -> (i32, i32) {
    %c0_i32 = arith.constant 0 : i32
    %c0_i32_0 = arith.constant 0 : i32
    return %arg0, %c0_i32 : i32, i32
  }
  func.func @transform_1(%arg0: i32) -> (i32, i32) {
    %c0_i32 = arith.constant 0 : i32
    %c0_i32_0 = arith.constant 0 : i32
    %c0_i32_1 = arith.constant 0 : i32
    return %c0_i32, %c0_i32_0 : i32, i32
  }
  func.func @transform_2(%arg0: i32) -> (i32, i32) {
    %c0_i32 = arith.constant 0 : i32
    %c0_i32_0 = arith.constant 0 : i32
    %c0_i32_1 = arith.constant 0 : i32
    return %c0_i32, %c0_i32_0 : i32, i32
  }
  func.func @transform_3(%arg0: i32) -> (i32, i32) {
    %c0_i32 = arith.constant 0 : i32
    %c0_i32_0 = arith.constant 0 : i32
    %c0_i32_1 = arith.constant 0 : i32
    return %c0_i32, %c0_i32_0 : i32, i32
  }
  func.func @transform_4(%arg0: i32) -> (i32, i32) {
    %c0_i32 = arith.constant 0 : i32
    %c0_i32_0 = arith.constant 0 : i32
    %c0_i32_1 = arith.constant 0 : i32
    return %c0_i32, %c0_i32_0 : i32, i32
  }
  func.func @transform_5(%arg0: i32) -> (i32, i32) {
    %c0_i32 = arith.constant 0 : i32
    %c0_i32_0 = arith.constant 0 : i32
    %c0_i32_1 = arith.constant 0 : i32
    return %c0_i32, %c0_i32_0 : i32, i32
  }
  func.func @transform_6(%arg0: i32) -> (i32, i32) {
    %c0_i32 = arith.constant 0 : i32
    %c0_i32_0 = arith.constant 0 : i32
    %c0_i32_1 = arith.constant 0 : i32
    return %c0_i32, %c0_i32_0 : i32, i32
  }
  func.func @transform_7(%arg0: i32) -> (i32, i32) {
    %c0_i32 = arith.constant 0 : i32
    %c0_i32_0 = arith.constant 0 : i32
    return %arg0, %c0_i32 : i32, i32
  }
}

</mosaic_0001>

<llo_original>
// kernel: tpu_custom_call.1
$region0: #{tpu_custom_call.1}
  #allocation0 [shape = 'u32[]', space=smem, size = 0x4, offset = 0x4, fixed_abs, tag = 'smem constant byte address 0x4 - core index']
  #allocation1 [shape = 'u32[144,128]{1,0:T(1,128)}', space=vmem, size = 0x12000, scoped, tag = 'internal scratch']
  %s0 = inlined_call_operand.vmem [shape: bf16[128,32], index: 0, kind: input, shape index: {}]
  %s1 = inlined_call_operand.hbm [shape: bf16[32,128], index: 1, kind: input, shape index: {}]
  %s2 = inlined_call_operand.vmem [shape: bf16[128,256], index: 2, kind: input, shape index: {}]
  %s3 = inlined_call_operand.hbm [shape: bf16[256,128], index: 3, kind: input, shape index: {}]
  %s4 = inlined_call_operand.vmem [shape: bf16[128,64], index: 4, kind: input, shape index: {}]
  %s5 = inlined_call_operand.vmem [shape: bf16[64,128], index: 5, kind: input, shape index: {}]
  %s6 = inlined_call_operand.hbm [shape: f32[3,768], index: 6, kind: input, shape index: {}]
  %s7 = inlined_call_operand.hbm [shape: f32[128,128], index: 7, kind: output, shape index: {}]
  %s8 = sld [smem:[#allocation0]]
  $region73: #{tpu_custom_call.1} parent=0
    _
  %s10 = ssub.s32 1, %s8
  %s11 = scalar_select 0, %s10, %s8
  $region1: #{tpu_custom_call.1} parent=0
    #allocation2 [shape = 'u8[8192]{0}', space=vmem, size = 0x2000, scoped, tag = 'input window, operand 1, single buffered']
    #allocation3 [shape = 's32[2]{0}', space=sflag, size = 0x8, scoped, tag = 'scoped memory for tpu_custom_call.1']
    #allocation4 [shape = 's32[2]{0}', space=sflag, size = 0x8, scoped, tag = 'scoped memory for tpu_custom_call.1']
    #allocation5 [shape = 'u8[65536]{0}', space=vmem, size = 0x10000, scoped, tag = 'input window, operand 3, single buffered']
    #allocation6 [shape = 's32[1]{0}', space=sflag, size = 0x4, scoped, tag = 'scoped memory for tpu_custom_call.1']
    #allocation7 [shape = 'u8[12288]{0}', space=vmem, size = 0x3000, scoped, tag = 'input window, operand 6, single buffered']
    #allocation8 [shape = 'u8[65536]{0}', space=vmem, size = 0x10000, scoped, tag = 'output window, operand 0']
    %12 = vsyncpa [#allocation3], 0
    %13 = vsyncpa [#allocation6], 0
    %14 = vsyncpa [#allocation4], 0
    %s15 = scalar_lea.sflag [#allocation4], 1
    %16 = vsyncpa %s15, 0
    loop: start=0, step=1, limit=4
    $region2: #{tpu_custom_call.1} parent=1 // loop_pre_header
      _
    $region3: #{tpu_custom_call.1} parent=1 // loop_header
      %s18 = sphi 0, %s22
      %p19 = scmp.ge.s32.totalorder %s18, 4
      %s28 = sphi 0, %s30
      %s31 = sphi 0, %s28
      %s32 = sphi 0, %s31
      %s48 = sphi 0, %s32
      %s52 = sphi 0, %s52
      %s54 = sphi 0, %s52
      %s55 = sphi 0, %s54
      %s69 = sphi 0, %s55
      %s73 = sphi 0, %s73
      %s75 = sphi 0, %s73
      %s76 = sphi 0, %s75
      %s90 = sphi 0, %s76
      %s94 = sphi 0, %s94
      %s96 = sphi 0, %s94
      %s97 = sphi 0, %s96
      %s111 = sphi 0, %s97
      %s115 = sphi 0, %s115
      %s117 = sphi 0, %s115
      %s118 = sphi 0, %s117
      %s132 = sphi 0, %s118
      %s136 = sphi 0, %s136
      %s138 = sphi 0, %s136
      %s139 = sphi 0, %s138
      %s153 = sphi 0, %s139
      %s157 = sphi 0, %s157
      %s159 = sphi 0, %s157
      %s160 = sphi 0, %s159
      %s174 = sphi 0, %s160
      %s180 = sphi 0, %s182
      %s183 = sphi 0, %s180
      %s184 = sphi 0, %s183
      %s200 = sphi 0, %s184
    $region4: #{tpu_custom_call.1} parent=1 // loop_header_branch
      %21 = sbr.rel (%p19) target = $region8
    $region5: #{tpu_custom_call.1} parent=1 // loop_body
      %s23 = ssub.s32 %s18, 1
      %s24 = ssub.s32 %s18, 2
      %s25 = sadd.s32 %s18, 1
      %s26 = ssub.s32 %s18, %s25
      %p27 = scmp.eq.s32.totalorder %s26, 0
      %s29 = sadd.s32 %s28, 1
      %s30 = scalar_select %p27, %s28, %s29
      %p33 = pneg %p27
      %p34 = scmp.eq.s32.totalorder %s18, 1
      %p35 = por %p33, %p34
      %p36 = scmp.ne.s32.totalorder %s28, %s31
      %p37 = scmp.eq.s32.totalorder %s18, 0
      %p38 = por %p36, %p37
      %p39 = scmp.ne.s32.totalorder %s28, %s31
      %p40 = scmp.eq.s32.totalorder %s23, 1
      %p41 = por %p39, %p40
      %p42 = scmp.ne.s32.totalorder %s31, %s32
      %p43 = scmp.eq.s32.totalorder %s23, 0
      %p44 = por %p42, %p43
      %p45 = scmp.ne.s32.totalorder %s31, %s32
      %p46 = scmp.eq.s32.totalorder %s24, 1
      %p47 = por %p45, %p46
      %p49 = scmp.ne.s32.totalorder %s32, %s48
      %p50 = scmp.eq.s32.totalorder %s24, 0
      %p51 = por %p49, %p50
      %s53 = sadd.s32 %s52, 1
      %p56 = scmp.eq.s32.totalorder %s18, 1
      %p57 = scmp.ne.s32.totalorder %s52, %s54
      %p58 = scmp.eq.s32.totalorder %s18, 0
      %p59 = por %p57, %p58
      %p60 = scmp.ne.s32.totalorder %s52, %s54
      %p61 = scmp.eq.s32.totalorder %s23, 1
      %p62 = por %p60, %p61
      %p63 = scmp.ne.s32.totalorder %s54, %s55
      %p64 = scmp.eq.s32.totalorder %s23, 0
      %p65 = por %p63, %p64
      %p66 = scmp.ne.s32.totalorder %s54, %s55
      %p67 = scmp.eq.s32.totalorder %s24, 1
      %p68 = por %p66, %p67
      %p70 = scmp.ne.s32.totalorder %s55, %s69
      %p71 = scmp.eq.s32.totalorder %s24, 0
      %p72 = por %p70, %p71
      %s74 = sadd.s32 %s73, 1
      %p77 = scmp.eq.s32.totalorder %s18, 1
      %p78 = scmp.ne.s32.totalorder %s73, %s75
      %p79 = scmp.eq.s32.totalorder %s18, 0
      %p80 = por %p78, %p79
      %p81 = scmp.ne.s32.totalorder %s73, %s75
      %p82 = scmp.eq.s32.totalorder %s23, 1
      %p83 = por %p81, %p82
      %p84 = scmp.ne.s32.totalorder %s75, %s76
      %p85 = scmp.eq.s32.totalorder %s23, 0
      %p86 = por %p84, %p85
      %p87 = scmp.ne.s32.totalorder %s75, %s76
      %p88 = scmp.eq.s32.totalorder %s24, 1
      %p89 = por %p87, %p88
      %p91 = scmp.ne.s32.totalorder %s76, %s90
      %p92 = scmp.eq.s32.totalorder %s24, 0
      %p93 = por %p91, %p92
      %s95 = sadd.s32 %s94, 1
      %p98 = scmp.eq.s32.totalorder %s18, 1
      %p99 = scmp.ne.s32.totalorder %s94, %s96
      %p100 = scmp.eq.s32.totalorder %s18, 0
      %p101 = por %p99, %p100
      %p102 = scmp.ne.s32.totalorder %s94, %s96
      %p103 = scmp.eq.s32.totalorder %s23, 1
      %p104 = por %p102, %p103
      %p105 = scmp.ne.s32.totalorder %s96, %s97
      %p106 = scmp.eq.s32.totalorder %s23, 0
      %p107 = por %p105, %p106
      %p108 = scmp.ne.s32.totalorder %s96, %s97
      %p109 = scmp.eq.s32.totalorder %s24, 1
      %p110 = por %p108, %p109
      %p112 = scmp.ne.s32.totalorder %s97, %s111
      %p113 = scmp.eq.s32.totalorder %s24, 0
      %p114 = por %p112, %p113
      %s116 = sadd.s32 %s115, 1
      %p119 = scmp.eq.s32.totalorder %s18, 1
      %p120 = scmp.ne.s32.totalorder %s115, %s117
      %p121 = scmp.eq.s32.totalorder %s18, 0
      %p122 = por %p120, %p121
      %p123 = scmp.ne.s32.totalorder %s115, %s117
      %p124 = scmp.eq.s32.totalorder %s23, 1
      %p125 = por %p123, %p124
      %p126 = scmp.ne.s32.totalorder %s117, %s118
      %p127 = scmp.eq.s32.totalorder %s23, 0
      %p128 = por %p126, %p127
      %p129 = scmp.ne.s32.totalorder %s117, %s118
      %p130 = scmp.eq.s32.totalorder %s24, 1
      %p131 = por %p129, %p130
      %p133 = scmp.ne.s32.totalorder %s118, %s132
      %p134 = scmp.eq.s32.totalorder %s24, 0
      %p135 = por %p133, %p134
      %s137 = sadd.s32 %s136, 1
      %p140 = scmp.eq.s32.totalorder %s18, 1
      %p141 = scmp.ne.s32.totalorder %s136, %s138
      %p142 = scmp.eq.s32.totalorder %s18, 0
      %p143 = por %p141, %p142
      %p144 = scmp.ne.s32.totalorder %s136, %s138
      %p145 = scmp.eq.s32.totalorder %s23, 1
      %p146 = por %p144, %p145
      %p147 = scmp.ne.s32.totalorder %s138, %s139
      %p148 = scmp.eq.s32.totalorder %s23, 0
      %p149 = por %p147, %p148
      %p150 = scmp.ne.s32.totalorder %s138, %s139
      %p151 = scmp.eq.s32.totalorder %s24, 1
      %p152 = por %p150, %p151
      %p154 = scmp.ne.s32.totalorder %s139, %s153
      %p155 = scmp.eq.s32.totalorder %s24, 0
      %p156 = por %p154, %p155
      %s158 = sadd.s32 %s157, 1
      %p161 = scmp.eq.s32.totalorder %s18, 1
      %p162 = scmp.ne.s32.totalorder %s157, %s159
      %p163 = scmp.eq.s32.totalorder %s18, 0
      %p164 = por %p162, %p163
      %p165 = scmp.ne.s32.totalorder %s157, %s159
      %p166 = scmp.eq.s32.totalorder %s23, 1
      %p167 = por %p165, %p166
      %p168 = scmp.ne.s32.totalorder %s159, %s160
      %p169 = scmp.eq.s32.totalorder %s23, 0
      %p170 = por %p168, %p169
      %p171 = scmp.ne.s32.totalorder %s159, %s160
      %p172 = scmp.eq.s32.totalorder %s24, 1
      %p173 = por %p171, %p172
      %p175 = scmp.ne.s32.totalorder %s160, %s174
      %p176 = scmp.eq.s32.totalorder %s24, 0
      %p177 = por %p175, %p176
      %s178 = ssub.s32 %s18, %s25
      %p179 = scmp.eq.s32.totalorder %s178, 0
      %s181 = sadd.s32 %s180, 1
      %s182 = scalar_select %p179, %s180, %s181
      %p185 = pneg %p179
      %p186 = scmp.eq.s32.totalorder %s18, 1
      %p187 = por %p185, %p186
      %p188 = scmp.ne.s32.totalorder %s180, %s183
      %p189 = scmp.eq.s32.totalorder %s18, 0
      %p190 = por %p188, %p189
      %p191 = scmp.ne.s32.totalorder %s180, %s183
      %p192 = scmp.eq.s32.totalorder %s23, 1
      %p193 = por %p191, %p192
      %p194 = scmp.ne.s32.totalorder %s183, %s184
      %p195 = scmp.eq.s32.totalorder %s23, 0
      %p196 = por %p194, %p195
      %p197 = scmp.ne.s32.totalorder %s183, %s184
      %p198 = scmp.eq.s32.totalorder %s24, 1
      %p199 = por %p197, %p198
      %p201 = scmp.ne.s32.totalorder %s184, %s200
      %p202 = scmp.eq.s32.totalorder %s24, 0
      %p203 = por %p201, %p202
      %p204 = scmp.le.s32.totalorder 1, %s18
      %p205 = scmp.lt.s32.totalorder %s18, 3
      %p206 = pnand %p204, %p205
      %p207 = pneg %p206
      // Predicated region
      $region9: #{tpu_custom_call.1} parent=5 // pred_check
        _
      $region10: #{tpu_custom_call.1} parent=5 // pred_check_branch
        %209 = sbr.rel (%p206) target = $region12
      $region11: #{tpu_custom_call.1} parent=5 // pred_region
        %s210 = ssub.s32 %s18, 1
        // Predicated region
        $region13: #{tpu_custom_call.1} parent=11 // pred_check
          %p211 = pneg %p65
        $region14: #{tpu_custom_call.1} parent=11 // pred_check_branch
          %213 = sbr.rel (%p211) target = $region16
        $region15: #{tpu_custom_call.1} parent=11 // pred_region
          %s215 = ssub.s32 256, 256
          %216 = vsyncadd [#allocation3], %s215
          %s217 = sshll.u32 [#allocation2], 4
          %s218 = int_to_ptr.vmem [resolvable:$true] %s217
          %223 = dma.hbm_to_vmem [thread:$0]  %s1, 256, %s218, [#allocation3], 64, 64, 4
        $region16: #{tpu_custom_call.1} parent=11 // pred_fallthru
          _
        // Predicated region
        $region17: #{tpu_custom_call.1} parent=11 // pred_check
          %p224 = pneg %p86
        $region18: #{tpu_custom_call.1} parent=11 // pred_check_branch
          %226 = sbr.rel (%p224) target = $region20
        $region19: #{tpu_custom_call.1} parent=11 // pred_region
          _
        $region20: #{tpu_custom_call.1} parent=11 // pred_fallthru
          _
        // Predicated region
        $region21: #{tpu_custom_call.1} parent=11 // pred_check
          %p227 = pneg %p107
        $region22: #{tpu_custom_call.1} parent=11 // pred_check_branch
          %229 = sbr.rel (%p227) target = $region24
        $region23: #{tpu_custom_call.1} parent=11 // pred_region
          %s231 = ssub.s32 2048, 2048
          %232 = vsyncadd [#allocation6], %s231
          %s233 = sshll.u32 [#allocation5], 4
          %s234 = int_to_ptr.vmem [resolvable:$true] %s233
          %239 = dma.hbm_to_vmem [thread:$0]  %s3, 2048, %s234, [#allocation6], 64, 64, 4
        $region24: #{tpu_custom_call.1} parent=11 // pred_fallthru
          _
        // Predicated region
        $region25: #{tpu_custom_call.1} parent=11 // pred_check
          %p240 = pneg %p128
        $region26: #{tpu_custom_call.1} parent=11 // pred_check_branch
          %242 = sbr.rel (%p240) target = $region28
        $region27: #{tpu_custom_call.1} parent=11 // pred_region
          _
        $region28: #{tpu_custom_call.1} parent=11 // pred_fallthru
          _
        // Predicated region
        $region29: #{tpu_custom_call.1} parent=11 // pred_check
          %p243 = pneg %p149
        $region30: #{tpu_custom_call.1} parent=11 // pred_check_branch
          %245 = sbr.rel (%p243) target = $region32
        $region31: #{tpu_custom_call.1} parent=11 // pred_region
          _
        $region32: #{tpu_custom_call.1} parent=11 // pred_fallthru
          _
        // Predicated region
        $region33: #{tpu_custom_call.1} parent=11 // pred_check
          %p246 = pneg %p170
        $region34: #{tpu_custom_call.1} parent=11 // pred_check_branch
          %248 = sbr.rel (%p246) target = $region36
        $region35: #{tpu_custom_call.1} parent=11 // pred_region
          %s250 = ssub.s32 384, 384
          %251 = vsyncadd [#allocation6], %s250
          %s253 = sshll.u32 [#allocation7], 4
          %s254 = int_to_ptr.vmem [resolvable:$true] %s253
          %256 = dma.hbm_to_vmem [thread:$0]  %s6, 384, %s254, [#allocation6]
        $region36: #{tpu_custom_call.1} parent=11 // pred_fallthru
          _
      $region12: #{tpu_custom_call.1} parent=5 // pred_fallthru
        _
      %p257 = scmp.lt.s32.totalorder %s18, 2
      // Predicated region
      $region37: #{tpu_custom_call.1} parent=5 // pred_check
        %p258 = pneg %p257
      $region38: #{tpu_custom_call.1} parent=5 // pred_check_branch
        %260 = sbr.rel (%p258) target = $region40
      $region39: #{tpu_custom_call.1} parent=5 // pred_region
        // Predicated region
        $region41: #{tpu_custom_call.1} parent=39 // pred_check
          %p261 = pneg %p38
        $region42: #{tpu_custom_call.1} parent=39 // pred_check_branch
          %263 = sbr.rel (%p261) target = $region44
        $region43: #{tpu_custom_call.1} parent=39 // pred_region
          %s264 = smul.u32 8, %s18
          %p265 = scmp.lt.s32.totalorder %s264, 15
          %s266 = scalar_select %p265, %s264, 15
          %s267 = smul.addr %s266, 4
          %s268 = scalar_lea.vmem %s0, %s267
          %s269 = smul.u32 8, %s18
        $region44: #{tpu_custom_call.1} parent=39 // pred_fallthru
          _
      $region40: #{tpu_custom_call.1} parent=5 // pred_fallthru
        _
      %p270 = scmp.le.s32.totalorder 1, %s18
      %p271 = scmp.lt.s32.totalorder %s18, 3
      %p272 = pnand %p270, %p271
      %p273 = pneg %p272
      // Predicated region
      $region45: #{tpu_custom_call.1} parent=5 // pred_check
        _
      $region46: #{tpu_custom_call.1} parent=5 // pred_check_branch
        %275 = sbr.rel (%p272) target = $region48
      $region47: #{tpu_custom_call.1} parent=5 // pred_region
        %s276 = ssub.s32 %s18, 1
        // Predicated region
        $region49: #{tpu_custom_call.1} parent=47 // pred_check
          %p277 = pneg %p65
        $region50: #{tpu_custom_call.1} parent=47 // pred_check_branch
          %279 = sbr.rel (%p277) target = $region52
        $region51: #{tpu_custom_call.1} parent=47 // pred_region
          %280 = dma.done [#allocation3], 256
        $region52: #{tpu_custom_call.1} parent=47 // pred_fallthru
          _
        // Predicated region
        $region53: #{tpu_custom_call.1} parent=47 // pred_check
          %p281 = pneg %p107
        $region54: #{tpu_custom_call.1} parent=47 // pred_check_branch
          %283 = sbr.rel (%p281) target = $region56
        $region55: #{tpu_custom_call.1} parent=47 // pred_region
          %284 = dma.done [#allocation6], 2048
        $region56: #{tpu_custom_call.1} parent=47 // pred_fallthru
          _
        // Predicated region
        $region57: #{tpu_custom_call.1} parent=47 // pred_check
          %p285 = pneg %p170
        $region58: #{tpu_custom_call.1} parent=47 // pred_check_branch
          %287 = sbr.rel (%p285) target = $region60
        $region59: #{tpu_custom_call.1} parent=47 // pred_region
          %288 = dma.done [#allocation6], 384
        $region60: #{tpu_custom_call.1} parent=47 // pred_fallthru
          _
        %s289 = smul.u32 8, %s23
        %p290 = scmp.lt.s32.totalorder %s289, 15
        %s291 = scalar_select %p290, %s289, 15
        %s292 = smul.addr %s291, 4
        %s293 = scalar_lea.vmem %s0, %s292
        %p294 = pneg %p44
        %p295 = pneg %p41
        %p296 = pneg %p65
        %p297 = pneg %p62
        %p298 = pneg %p86
        %p299 = pneg %p83
        %p300 = pneg %p107
        %p301 = pneg %p104
        %p302 = pneg %p128
        %p303 = pneg %p125
        %p304 = pneg %p149
        %p305 = pneg %p146
        %p306 = pneg %p170
        %p307 = pneg %p167
        %p308 = pneg %p196
        %p309 = pneg %p193
        %s310 = sand.u32 %s183, 1
        %s311 = scalar_lea.sflag [#allocation4], %s310
        %s312 = sand.u32 %s183, 1
        %s313 = smul.addr %s312, 64
        %s314 = scalar_lea.vmem [#allocation8], %s313
        %s315 = smul.u32 8, %s23
        %p316 = scmp.lt.s32.totalorder %s315, 15
        %s317 = scalar_select %p316, %s315, 15
        %s318 = smul.addr %s317, 4
        %s319 = scalar_lea.vmem %s0, %s318
        %s320 = smul.u32 8, %s23
        %s321 = smul.u32 8, %s23
        %v323 = vld [vmem:[%s319] sm:$0xf]
        %v324 = vld [vmem:[%s319 + $0x4] sm:$0xf]
        %v325 = vld [vmem:[%s319 + $0x8] sm:$0xf]
        %v326 = vld [vmem:[%s319 + $0xc] sm:$0xf]
        %v327 = vld [vmem:[%s319 + $0x10] sm:$0xf]
        %v328 = vld [vmem:[%s319 + $0x14] sm:$0xf]
        %v329 = vld [vmem:[%s319 + $0x18] sm:$0xf]
        %v330 = vld [vmem:[%s319 + $0x1c] sm:$0xf]
        %v331 = vld [vmem:[#allocation7] sm:$0x1]
        %v332 = vld [vmem:[#allocation7 + $0x1] sm:$0x1]
        %v333 = vld [vmem:[#allocation7 + $0x2] sm:$0x1]
        %v334 = vld [vmem:[#allocation2] sm:$0xf]
        %v335 = vld [vmem:[#allocation2 + $0x4] sm:$0xf]
        %v336 = vld [vmem:[#allocation2 + $0x8] sm:$0xf]
        %v337 = vld [vmem:[#allocation2 + $0xc] sm:$0xf]
        %v338 = vlaneseq
        %v339 = vshrl.u32 %v338, 7
        %v340 = vsub.s32 0, %v339
        %v341 = vrot.slane %v331, %v340
        %v350 = vunpack.c.l.b16 %v323
        %v351 = vunpack.c.l.b16 %v324
        %v352 = vunpack.c.l.b16 %v325
        %v353 = vunpack.c.l.b16 %v326
        %v354 = vunpack.c.l.b16 %v327
        %v355 = vunpack.c.l.b16 %v328
        %v356 = vunpack.c.l.b16 %v329
        %v357 = vunpack.c.l.b16 %v330
        %v358 = vpack.c.b16 %v351, %v350
        %v359 = vpack.c.b16 %v353, %v352
        %v360 = vpack.c.b16 %v355, %v354
        %v361 = vpack.c.b16 %v357, %v356
        %v366 = vunpack.c.l.b16 %v334
        %v367 = vunpack.c.l.b16 %v335
        %v368 = vunpack.c.l.b16 %v336
        %v369 = vunpack.c.l.b16 %v337
        %v370 = vpack.c.b16 %v367, %v366
        %v371 = vpack.c.b16 %v369, %v368
        %vm374 = vcmask 261120
        %v376 = vsel %vm374, %v358, 0
        %v379 = vsel %vm374, %v359, 0
        %v382 = vsel %vm374, %v360, 0
        %v385 = vsel %vm374, %v361, 0
        %387 = vmatprep.subr.bf16.mxu0 0
        %388 = vmatpush1.bf16.msra.mxu0 %v370
        %389 = vmatprep.subr.bf16.mxu0 0
        %390 = vmatpush1.bf16.msra.mxu0 %v371
        %391 = vmatprep.subr.bf16.mxu0 0
        %392 = vmatpush1.bf16.msra.mxu0 0
        %393 = vmatprep.subr.bf16.mxu0 0
        %394 = vmatpush1.bf16.msra.mxu0 0
        %395 = vmatprep.subr.bf16.mxu0 0
        %396 = vmatpush1.bf16.msra.mxu0 0
        %397 = vmatprep.subr.bf16.mxu0 0
        %398 = vmatpush1.bf16.msra.mxu0 0
        %399 = vmatprep.subr.bf16.mxu0 0
        %400 = vmatpush1.bf16.msra.mxu0 0
        %401 = vmatprep.subr.bf16.mxu0 0
        %402 = vmatpush1.bf16.msra.mxu0 0
        %403 = vmatprep.subr.bf16.mxu0 0
        %404 = vmatpush1.bf16.msra.mxu0 0
        %405 = vmatprep.subr.bf16.mxu0 0
        %406 = vmatpush1.bf16.msra.mxu0 0
        %407 = vmatprep.subr.bf16.mxu0 0
        %408 = vmatpush1.bf16.msra.mxu0 0
        %409 = vmatprep.subr.bf16.mxu0 0
        %410 = vmatpush1.bf16.msra.mxu0 0
        %411 = vmatprep.subr.bf16.mxu0 0
        %412 = vmatpush1.bf16.msra.mxu0 0
        %413 = vmatprep.subr.bf16.mxu0 0
        %414 = vmatpush1.bf16.msra.mxu0 0
        %415 = vmatprep.subr.bf16.mxu0 0
        %416 = vmatpush1.bf16.msra.mxu0 0
        %417 = vmatprep.subr.bf16.mxu0 0
        %418 = vmatpush1.bf16.msra.mxu0 0
        %419 = vmatprep.mubr.bf16.mxu0 0
        %420 = vmatmul.mubr.bf16.gmra.mrb[0].mxu0 %v376
        %v421 = vpop.f32.mrb[0].mxu0
        %v422 = vadd.f32 %v341, %v421
        %v423 = vpop.f32.mrb[0].mxu0
        %v424 = vpop.f32.mrb[0].mxu0
        %v425 = vadd.f32 %v341, %v424
        %v426 = vpop.f32.mrb[0].mxu0
        %427 = vmatprep.mubr.bf16.mxu0 0
        %428 = vmatmul.mubr.bf16.gmra.mrb[0].mxu0 %v379
        %v429 = vpop.f32.mrb[0].mxu0
        %v430 = vadd.f32 %v341, %v429
        %v431 = vpop.f32.mrb[0].mxu0
        %v432 = vpop.f32.mrb[0].mxu0
        %v433 = vadd.f32 %v341, %v432
        %v434 = vpop.f32.mrb[0].mxu0
        %435 = vmatprep.mubr.bf16.mxu0 0
        %436 = vmatmul.mubr.bf16.gmra.mrb[0].mxu0 %v382
        %v437 = vpop.f32.mrb[0].mxu0
        %v438 = vadd.f32 %v341, %v437
        %v439 = vpop.f32.mrb[0].mxu0
        %v440 = vpop.f32.mrb[0].mxu0
        %v441 = vadd.f32 %v341, %v440
        %v442 = vpop.f32.mrb[0].mxu0
        %443 = vmatprep.mubr.bf16.mxu0 0
        %444 = vmatmul.mubr.bf16.gmra.mrb[0].mxu0 %v385
        %v445 = vpop.f32.mrb[0].mxu0
        %v446 = vadd.f32 %v341, %v445
        %v447 = vpop.f32.mrb[0].mxu0
        %v448 = vpop.f32.mrb[0].mxu0
        %v449 = vadd.f32 %v341, %v448
        %v450 = vpop.f32.mrb[0].mxu0
        %451 = vdwg.mxu0
        %452 = vadd.xlane.f32.xlu0 %v422
        %v453 = vpop.xlane.xlu0 %452
        %454 = vadd.xlane.f32.xlu0 %v425
        %v455 = vpop.xlane.xlu0 %454
        %456 = vadd.xlane.f32.xlu0 %v430
        %v457 = vpop.xlane.xlu0 %456
        %458 = vadd.xlane.f32.xlu0 %v433
        %v459 = vpop.xlane.xlu0 %458
        %460 = vadd.xlane.f32.xlu0 %v438
        %v461 = vpop.xlane.xlu0 %460
        %462 = vadd.xlane.f32.xlu0 %v441
        %v463 = vpop.xlane.xlu0 %462
        %464 = vadd.xlane.f32.xlu0 %v446
        %v465 = vpop.xlane.xlu0 %464
        %466 = vadd.xlane.f32.xlu0 %v449
        %v467 = vpop.xlane.xlu0 %466
        %v468 = vrcp.pop 128.0
        %v469 = vmul.f32 %v453, %v468
        %v470 = vmul.f32 %v455, %v468
        %v471 = vmul.f32 %v457, %v468
        %v472 = vmul.f32 %v459, %v468
        %v473 = vmul.f32 %v461, %v468
        %v474 = vmul.f32 %v463, %v468
        %v475 = vmul.f32 %v465, %v468
        %v476 = vmul.f32 %v467, %v468
        %v477 = vmul.f32 %v422, %v422
        %v478 = vmul.f32 %v425, %v425
        %v479 = vmul.f32 %v430, %v430
        %v480 = vmul.f32 %v433, %v433
        %v481 = vmul.f32 %v438, %v438
        %v482 = vmul.f32 %v441, %v441
        %v483 = vmul.f32 %v446, %v446
        %v484 = vmul.f32 %v449, %v449
        %485 = vadd.xlane.f32.xlu0 %v477
        %v486 = vpop.xlane.xlu0 %485
        %487 = vadd.xlane.f32.xlu0 %v478
        %v488 = vpop.xlane.xlu0 %487
        %489 = vadd.xlane.f32.xlu0 %v479
        %v490 = vpop.xlane.xlu0 %489
        %491 = vadd.xlane.f32.xlu0 %v480
        %v492 = vpop.xlane.xlu0 %491
        %493 = vadd.xlane.f32.xlu0 %v481
        %v494 = vpop.xlane.xlu0 %493
        %495 = vadd.xlane.f32.xlu0 %v482
        %v496 = vpop.xlane.xlu0 %495
        %497 = vadd.xlane.f32.xlu0 %v483
        %v498 = vpop.xlane.xlu0 %497
        %499 = vadd.xlane.f32.xlu0 %v484
        %v500 = vpop.xlane.xlu0 %499
        %v501 = vmul.f32 %v486, %v468
        %v502 = vmul.f32 %v488, %v468
        %v503 = vmul.f32 %v490, %v468
        %v504 = vmul.f32 %v492, %v468
        %v505 = vmul.f32 %v494, %v468
        %v506 = vmul.f32 %v496, %v468
        %v507 = vmul.f32 %v498, %v468
        %v508 = vmul.f32 %v500, %v468
        %v509 = vmul.f32 %v469, %v469
        %v510 = vmul.f32 %v470, %v470
        %v511 = vmul.f32 %v471, %v471
        %v512 = vmul.f32 %v472, %v472
        %v513 = vmul.f32 %v473, %v473
        %v514 = vmul.f32 %v474, %v474
        %v515 = vmul.f32 %v475, %v475
        %v516 = vmul.f32 %v476, %v476
        %v517 = vsub.f32 %v501, %v509
        %v518 = vsub.f32 %v502, %v510
        %v519 = vsub.f32 %v503, %v511
        %v520 = vsub.f32 %v504, %v512
        %v521 = vsub.f32 %v505, %v513
        %v522 = vsub.f32 %v506, %v514
        %v523 = vsub.f32 %v507, %v515
        %v524 = vsub.f32 %v508, %v516
        %v525 = vmax.f32 %v517, 0.0
        %v526 = vmax.f32 %v518, 0.0
        %v527 = vmax.f32 %v519, 0.0
        %v528 = vmax.f32 %v520, 0.0
        %v529 = vmax.f32 %v521, 0.0
        %v530 = vmax.f32 %v522, 0.0
        %v531 = vmax.f32 %v523, 0.0
        %v532 = vmax.f32 %v524, 0.0
        %v533 = vsub.f32 %v422, %v469
        %v534 = vsub.f32 %v425, %v470
        %v535 = vsub.f32 %v430, %v471
        %v536 = vsub.f32 %v433, %v472
        %v537 = vsub.f32 %v438, %v473
        %v538 = vsub.f32 %v441, %v474
        %v539 = vsub.f32 %v446, %v475
        %v540 = vsub.f32 %v449, %v476
        %v541 = vadd.f32 %v525, 1e-05
        %v542 = vadd.f32 %v526, 1e-05
        %v543 = vadd.f32 %v527, 1e-05
        %v544 = vadd.f32 %v528, 1e-05
        %v545 = vadd.f32 %v529, 1e-05
        %v546 = vadd.f32 %v530, 1e-05
        %v547 = vadd.f32 %v531, 1e-05
        %v548 = vadd.f32 %v532, 1e-05
        %v549 = vrsqrt.pop %v541
        %v550 = vrsqrt.pop %v542
        %v551 = vrsqrt.pop %v543
        %v552 = vrsqrt.pop %v544
        %v553 = vrsqrt.pop %v545
        %v554 = vrsqrt.pop %v546
        %v555 = vrsqrt.pop %v547
        %v556 = vrsqrt.pop %v548
        %v557 = vmul.f32 %v533, %v549
        %v558 = vmul.f32 %v534, %v550
        %v559 = vmul.f32 %v535, %v551
        %v560 = vmul.f32 %v536, %v552
        %v561 = vmul.f32 %v537, %v553
        %v562 = vmul.f32 %v538, %v554
        %v563 = vmul.f32 %v539, %v555
        %v564 = vmul.f32 %v540, %v556
        %v565 = vlaneseq
        %v566 = vshrl.u32 %v565, 7
        %v567 = vsub.s32 0, %v566
        %v568 = vrot.slane %v332, %v567
        %v569 = vmul.f32 %v557, %v568
        %v570 = vmul.f32 %v558, %v568
        %v571 = vmul.f32 %v559, %v568
        %v572 = vmul.f32 %v560, %v568
        %v573 = vmul.f32 %v561, %v568
        %v574 = vmul.f32 %v562, %v568
        %v575 = vmul.f32 %v563, %v568
        %v576 = vmul.f32 %v564, %v568
        %v577 = vlaneseq
        %v578 = vshrl.u32 %v577, 7
        %v579 = vsub.s32 0, %v578
        %v580 = vrot.slane %v333, %v579
        %v581 = vadd.f32 %v569, %v580
        %v582 = vadd.f32 %v570, %v580
        %v583 = vadd.f32 %v571, %v580
        %v584 = vadd.f32 %v572, %v580
        %v585 = vadd.f32 %v573, %v580
        %v586 = vadd.f32 %v574, %v580
        %v587 = vadd.f32 %v575, %v580
        %v588 = vadd.f32 %v576, %v580
        %v589 = vmax.f32 %v581, 0.0
        %v590 = vmax.f32 %v582, 0.0
        %v591 = vmax.f32 %v583, 0.0
        %v592 = vmax.f32 %v584, 0.0
        %v593 = vmax.f32 %v585, 0.0
        %v594 = vmax.f32 %v586, 0.0
        %v595 = vmax.f32 %v587, 0.0
        %v596 = vmax.f32 %v588, 0.0
        %s597 = scalar_lea.vmem [#allocation7], 4
        %v598 = vld [vmem:[%s597] ss:$4 sm:$0x3]
        %s599 = scalar_lea.vmem [#allocation7], 5
        %v600 = vld [vmem:[%s599] ss:$4 sm:$0x3]
        %s601 = scalar_lea.vmem [#allocation7], 6
        %v602 = vld [vmem:[%s601] ss:$4 sm:$0x3]
        %v603 = vpack.c.bf16 %v590, %v589
        %v604 = vpack.c.bf16 %v592, %v591
        %v605 = vpack.c.bf16 %v594, %v593
        %v606 = vpack.c.bf16 %v596, %v595
        %v607 = vld [vmem:[%s2] sm:$0xff]
        %v608 = vld [vmem:[%s2 + $0x8] sm:$0xff]
        %v609 = vld [vmem:[%s2 + $0x10] sm:$0xff]
        %v610 = vld [vmem:[%s2 + $0x18] sm:$0xff]
        %v611 = vld [vmem:[%s2 + $0x20] sm:$0xff]
        %v612 = vld [vmem:[%s2 + $0x28] sm:$0xff]
        %v613 = vld [vmem:[%s2 + $0x30] sm:$0xff]
        %v614 = vld [vmem:[%s2 + $0x38] sm:$0xff]
        %v615 = vld [vmem:[%s2 + $0x40] sm:$0xff]
        %v616 = vld [vmem:[%s2 + $0x48] sm:$0xff]
        %v617 = vld [vmem:[%s2 + $0x50] sm:$0xff]
        %v618 = vld [vmem:[%s2 + $0x58] sm:$0xff]
        %v619 = vld [vmem:[%s2 + $0x60] sm:$0xff]
        %v620 = vld [vmem:[%s2 + $0x68] sm:$0xff]
        %v621 = vld [vmem:[%s2 + $0x70] sm:$0xff]
        %v622 = vld [vmem:[%s2 + $0x78] sm:$0xff]
        %v624 = vlaneseq
        %v625 = vshrl.u32 %v624, 7
        %v626 = vsub.s32 0, %v625
        %v627 = vrot.slane %v598, %v626
        %v628 = vlaneseq
        %v629 = vshrl.u32 %v628, 7
        %v630 = vsub.s32 1, %v629
        %v631 = vrot.slane %v598, %v630
        %v650 = vunpack.c.l.b16 %v607
        %v651 = vunpack.c.h.b16 %v607
        %v652 = vunpack.c.l.b16 %v608
        %v653 = vunpack.c.h.b16 %v608
        %v654 = vunpack.c.l.b16 %v609
        %v655 = vunpack.c.h.b16 %v609
        %v656 = vunpack.c.l.b16 %v610
        %v657 = vunpack.c.h.b16 %v610
        %v658 = vunpack.c.l.b16 %v611
        %v659 = vunpack.c.h.b16 %v611
        %v660 = vunpack.c.l.b16 %v612
        %v661 = vunpack.c.h.b16 %v612
        %v662 = vunpack.c.l.b16 %v613
        %v663 = vunpack.c.h.b16 %v613
        %v664 = vunpack.c.l.b16 %v614
        %v665 = vunpack.c.h.b16 %v614
        %v666 = vunpack.c.l.b16 %v615
        %v667 = vunpack.c.h.b16 %v615
        %v668 = vunpack.c.l.b16 %v616
        %v669 = vunpack.c.h.b16 %v616
        %v670 = vunpack.c.l.b16 %v617
        %v671 = vunpack.c.h.b16 %v617
        %v672 = vunpack.c.l.b16 %v618
        %v673 = vunpack.c.h.b16 %v618
        %v674 = vunpack.c.l.b16 %v619
        %v675 = vunpack.c.h.b16 %v619
        %v676 = vunpack.c.l.b16 %v620
        %v677 = vunpack.c.h.b16 %v620
        %v678 = vunpack.c.l.b16 %v621
        %v679 = vunpack.c.h.b16 %v621
        %v680 = vunpack.c.l.b16 %v622
        %v681 = vunpack.c.h.b16 %v622
        %v682 = vpack.c.b16 %v652, %v650
        %v683 = vpack.c.b16 %v653, %v651
        %v684 = vpack.c.b16 %v656, %v654
        %v685 = vpack.c.b16 %v657, %v655
        %v686 = vpack.c.b16 %v660, %v658
        %v687 = vpack.c.b16 %v661, %v659
        %v688 = vpack.c.b16 %v664, %v662
        %v689 = vpack.c.b16 %v665, %v663
        %v690 = vpack.c.b16 %v668, %v666
        %v691 = vpack.c.b16 %v669, %v667
        %v692 = vpack.c.b16 %v672, %v670
        %v693 = vpack.c.b16 %v673, %v671
        %v694 = vpack.c.b16 %v676, %v674
        %v695 = vpack.c.b16 %v677, %v675
        %v696 = vpack.c.b16 %v680, %v678
        %v697 = vpack.c.b16 %v681, %v679
        %714 = vmatprep.subr.bf16.mxu0 %v683
        %715 = vmatpush1.bf16.msra.mxu0 %v682
        %716 = vmatprep.subr.bf16.mxu0 %v685
        %717 = vmatpush1.bf16.msra.mxu0 %v684
        %718 = vmatprep.subr.bf16.mxu0 %v687
        %719 = vmatpush1.bf16.msra.mxu0 %v686
        %720 = vmatprep.subr.bf16.mxu0 %v689
        %721 = vmatpush1.bf16.msra.mxu0 %v688
        %722 = vmatprep.subr.bf16.mxu0 %v691
        %723 = vmatpush1.bf16.msra.mxu0 %v690
        %724 = vmatprep.subr.bf16.mxu0 %v693
        %725 = vmatpush1.bf16.msra.mxu0 %v692
        %726 = vmatprep.subr.bf16.mxu0 %v695
        %727 = vmatpush1.bf16.msra.mxu0 %v694
        %728 = vmatprep.subr.bf16.mxu0 %v697
        %729 = vmatpush1.bf16.msra.mxu0 %v696
        %730 = vmatprep.subr.bf16.mxu0 0
        %731 = vmatpush1.bf16.msra.mxu0 0
        %732 = vmatprep.subr.bf16.mxu0 0
        %733 = vmatpush1.bf16.msra.mxu0 0
        %734 = vmatprep.subr.bf16.mxu0 0
        %735 = vmatpush1.bf16.msra.mxu0 0
        %736 = vmatprep.subr.bf16.mxu0 0
        %737 = vmatpush1.bf16.msra.mxu0 0
        %738 = vmatprep.subr.bf16.mxu0 0
        %739 = vmatpush1.bf16.msra.mxu0 0
        %740 = vmatprep.subr.bf16.mxu0 0
        %741 = vmatpush1.bf16.msra.mxu0 0
        %742 = vmatprep.subr.bf16.mxu0 0
        %743 = vmatpush1.bf16.msra.mxu0 0
        %744 = vmatprep.subr.bf16.mxu0 0
        %745 = vmatpush1.bf16.msra.mxu0 0
        %746 = vmatprep.mubr.bf16.mxu0 0
        %747 = vmatmul.mubr.bf16.gmra.mrb[0].mxu0 %v603
        %v748 = vpop.f32.mrb[0].mxu0
        %v749 = vadd.f32 %v627, %v748
        %v750 = vpop.f32.mrb[0].mxu0
        %v751 = vadd.f32 %v631, %v750
        %v752 = vpop.f32.mrb[0].mxu0
        %v753 = vadd.f32 %v627, %v752
        %v754 = vpop.f32.mrb[0].mxu0
        %v755 = vadd.f32 %v631, %v754
        %756 = vmatprep.mubr.bf16.mxu0 0
        %757 = vmatmul.mubr.bf16.gmra.mrb[0].mxu0 %v604
        %v758 = vpop.f32.mrb[0].mxu0
        %v759 = vadd.f32 %v627, %v758
        %v760 = vpop.f32.mrb[0].mxu0
        %v761 = vadd.f32 %v631, %v760
        %v762 = vpop.f32.mrb[0].mxu0
        %v763 = vadd.f32 %v627, %v762
        %v764 = vpop.f32.mrb[0].mxu0
        %v765 = vadd.f32 %v631, %v764
        %766 = vmatprep.mubr.bf16.mxu0 0
        %767 = vmatmul.mubr.bf16.gmra.mrb[0].mxu0 %v605
        %v768 = vpop.f32.mrb[0].mxu0
        %v769 = vadd.f32 %v627, %v768
        %v770 = vpop.f32.mrb[0].mxu0
        %v771 = vadd.f32 %v631, %v770
        %v772 = vpop.f32.mrb[0].mxu0
        %v773 = vadd.f32 %v627, %v772
        %v774 = vpop.f32.mrb[0].mxu0
        %v775 = vadd.f32 %v631, %v774
        %776 = vmatprep.mubr.bf16.mxu0 0
        %777 = vmatmul.mubr.bf16.gmra.mrb[0].mxu0 %v606
        %v778 = vpop.f32.mrb[0].mxu0
        %v779 = vadd.f32 %v627, %v778
        %v780 = vpop.f32.mrb[0].mxu0
        %v781 = vadd.f32 %v631, %v780
        %v782 = vpop.f32.mrb[0].mxu0
        %v783 = vadd.f32 %v627, %v782
        %v784 = vpop.f32.mrb[0].mxu0
        %v785 = vadd.f32 %v631, %v784
        %786 = vdwg.mxu0
        %v787 = vadd.f32 %v749, %v751
        %788 = vadd.xlane.f32.xlu0 %v787
        %v789 = vpop.xlane.xlu0 %788
        %v790 = vadd.f32 %v753, %v755
        %791 = vadd.xlane.f32.xlu0 %v790
        %v792 = vpop.xlane.xlu0 %791
        %v793 = vadd.f32 %v759, %v761
        %794 = vadd.xlane.f32.xlu0 %v793
        %v795 = vpop.xlane.xlu0 %794
        %v796 = vadd.f32 %v763, %v765
        %797 = vadd.xlane.f32.xlu0 %v796
        %v798 = vpop.xlane.xlu0 %797
        %v799 = vadd.f32 %v769, %v771
        %800 = vadd.xlane.f32.xlu0 %v799
        %v801 = vpop.xlane.xlu0 %800
        %v802 = vadd.f32 %v773, %v775
        %803 = vadd.xlane.f32.xlu0 %v802
        %v804 = vpop.xlane.xlu0 %803
        %v805 = vadd.f32 %v779, %v781
        %806 = vadd.xlane.f32.xlu0 %v805
        %v807 = vpop.xlane.xlu0 %806
        %v808 = vadd.f32 %v783, %v785
        %809 = vadd.xlane.f32.xlu0 %v808
        %v810 = vpop.xlane.xlu0 %809
        %v811 = vrcp.pop 256.0
        %v812 = vmul.f32 %v789, %v811
        %v813 = vmul.f32 %v792, %v811
        %v814 = vmul.f32 %v795, %v811
        %v815 = vmul.f32 %v798, %v811
        %v816 = vmul.f32 %v801, %v811
        %v817 = vmul.f32 %v804, %v811
        %v818 = vmul.f32 %v807, %v811
        %v819 = vmul.f32 %v810, %v811
        %v820 = vmul.f32 %v749, %v749
        %v821 = vmul.f32 %v751, %v751
        %v822 = vmul.f32 %v753, %v753
        %v823 = vmul.f32 %v755, %v755
        %v824 = vmul.f32 %v759, %v759
        %v825 = vmul.f32 %v761, %v761
        %v826 = vmul.f32 %v763, %v763
        %v827 = vmul.f32 %v765, %v765
        %v828 = vmul.f32 %v769, %v769
        %v829 = vmul.f32 %v771, %v771
        %v830 = vmul.f32 %v773, %v773
        %v831 = vmul.f32 %v775, %v775
        %v832 = vmul.f32 %v779, %v779
        %v833 = vmul.f32 %v781, %v781
        %v834 = vmul.f32 %v783, %v783
        %v835 = vmul.f32 %v785, %v785
        %v836 = vadd.f32 %v820, %v821
        %837 = vadd.xlane.f32.xlu0 %v836
        %v838 = vpop.xlane.xlu0 %837
        %v839 = vadd.f32 %v822, %v823
        %840 = vadd.xlane.f32.xlu0 %v839
        %v841 = vpop.xlane.xlu0 %840
        %v842 = vadd.f32 %v824, %v825
        %843 = vadd.xlane.f32.xlu0 %v842
        %v844 = vpop.xlane.xlu0 %843
        %v845 = vadd.f32 %v826, %v827
        %846 = vadd.xlane.f32.xlu0 %v845
        %v847 = vpop.xlane.xlu0 %846
        %v848 = vadd.f32 %v828, %v829
        %849 = vadd.xlane.f32.xlu0 %v848
        %v850 = vpop.xlane.xlu0 %849
        %v851 = vadd.f32 %v830, %v831
        %852 = vadd.xlane.f32.xlu0 %v851
        %v853 = vpop.xlane.xlu0 %852
        %v854 = vadd.f32 %v832, %v833
        %855 = vadd.xlane.f32.xlu0 %v854
        %v856 = vpop.xlane.xlu0 %855
        %v857 = vadd.f32 %v834, %v835
        %858 = vadd.xlane.f32.xlu0 %v857
        %v859 = vpop.xlane.xlu0 %858
        %v860 = vmul.f32 %v838, %v811
        %v861 = vmul.f32 %v841, %v811
        %v862 = vmul.f32 %v844, %v811
        %v863 = vmul.f32 %v847, %v811
        %v864 = vmul.f32 %v850, %v811
        %v865 = vmul.f32 %v853, %v811
        %v866 = vmul.f32 %v856, %v811
        %v867 = vmul.f32 %v859, %v811
        %v868 = vmul.f32 %v812, %v812
        %v869 = vmul.f32 %v813, %v813
        %v870 = vmul.f32 %v814, %v814
        %v871 = vmul.f32 %v815, %v815
        %v872 = vmul.f32 %v816, %v816
        %v873 = vmul.f32 %v817, %v817
        %v874 = vmul.f32 %v818, %v818
        %v875 = vmul.f32 %v819, %v819
        %v876 = vsub.f32 %v860, %v868
        %v877 = vsub.f32 %v861, %v869
        %v878 = vsub.f32 %v862, %v870
        %v879 = vsub.f32 %v863, %v871
        %v880 = vsub.f32 %v864, %v872
        %v881 = vsub.f32 %v865, %v873
        %v882 = vsub.f32 %v866, %v874
        %v883 = vsub.f32 %v867, %v875
        %v884 = vmax.f32 %v876, 0.0
        %v885 = vmax.f32 %v877, 0.0
        %v886 = vmax.f32 %v878, 0.0
        %v887 = vmax.f32 %v879, 0.0
        %v888 = vmax.f32 %v880, 0.0
        %v889 = vmax.f32 %v881, 0.0
        %v890 = vmax.f32 %v882, 0.0
        %v891 = vmax.f32 %v883, 0.0
        %v892 = vsub.f32 %v749, %v812
        %v893 = vsub.f32 %v751, %v812
        %v894 = vsub.f32 %v753, %v813
        %v895 = vsub.f32 %v755, %v813
        %v896 = vsub.f32 %v759, %v814
        %v897 = vsub.f32 %v761, %v814
        %v898 = vsub.f32 %v763, %v815
        %v899 = vsub.f32 %v765, %v815
        %v900 = vsub.f32 %v769, %v816
        %v901 = vsub.f32 %v771, %v816
        %v902 = vsub.f32 %v773, %v817
        %v903 = vsub.f32 %v775, %v817
        %v904 = vsub.f32 %v779, %v818
        %v905 = vsub.f32 %v781, %v818
        %v906 = vsub.f32 %v783, %v819
        %v907 = vsub.f32 %v785, %v819
        %v908 = vadd.f32 %v884, 1e-05
        %v909 = vadd.f32 %v885, 1e-05
        %v910 = vadd.f32 %v886, 1e-05
        %v911 = vadd.f32 %v887, 1e-05
        %v912 = vadd.f32 %v888, 1e-05
        %v913 = vadd.f32 %v889, 1e-05
        %v914 = vadd.f32 %v890, 1e-05
        %v915 = vadd.f32 %v891, 1e-05
        %v916 = vrsqrt.pop %v908
        %v917 = vrsqrt.pop %v909
        %v918 = vrsqrt.pop %v910
        %v919 = vrsqrt.pop %v911
        %v920 = vrsqrt.pop %v912
        %v921 = vrsqrt.pop %v913
        %v922 = vrsqrt.pop %v914
        %v923 = vrsqrt.pop %v915
        %v924 = vmul.f32 %v892, %v916
        %v925 = vmul.f32 %v893, %v916
        %v926 = vmul.f32 %v894, %v917
        %v927 = vmul.f32 %v895, %v917
        %v928 = vmul.f32 %v896, %v918
        %v929 = vmul.f32 %v897, %v918
        %v930 = vmul.f32 %v898, %v919
        %v931 = vmul.f32 %v899, %v919
        %v932 = vmul.f32 %v900, %v920
        %v933 = vmul.f32 %v901, %v920
        %v934 = vmul.f32 %v902, %v921
        %v935 = vmul.f32 %v903, %v921
        %v936 = vmul.f32 %v904, %v922
        %v937 = vmul.f32 %v905, %v922
        %v938 = vmul.f32 %v906, %v923
        %v939 = vmul.f32 %v907, %v923
        %v941 = vlaneseq
        %v942 = vshrl.u32 %v941, 7
        %v943 = vsub.s32 0, %v942
        %v944 = vrot.slane %v600, %v943
        %v945 = vlaneseq
        %v946 = vshrl.u32 %v945, 7
        %v947 = vsub.s32 1, %v946
        %v948 = vrot.slane %v600, %v947
        %v951 = vmul.f32 %v924, %v944
        %v952 = vmul.f32 %v925, %v948
        %v953 = vmul.f32 %v926, %v944
        %v954 = vmul.f32 %v927, %v948
        %v955 = vmul.f32 %v928, %v944
        %v956 = vmul.f32 %v929, %v948
        %v957 = vmul.f32 %v930, %v944
        %v958 = vmul.f32 %v931, %v948
        %v959 = vmul.f32 %v932, %v944
        %v960 = vmul.f32 %v933, %v948
        %v961 = vmul.f32 %v934, %v944
        %v962 = vmul.f32 %v935, %v948
        %v963 = vmul.f32 %v936, %v944
        %v964 = vmul.f32 %v937, %v948
        %v965 = vmul.f32 %v938, %v944
        %v966 = vmul.f32 %v939, %v948
        %v968 = vlaneseq
        %v969 = vshrl.u32 %v968, 7
        %v970 = vsub.s32 0, %v969
        %v971 = vrot.slane %v602, %v970
        %v972 = vlaneseq
        %v973 = vshrl.u32 %v972, 7
        %v974 = vsub.s32 1, %v973
        %v975 = vrot.slane %v602, %v974
        %v978 = vadd.f32 %v951, %v971
        %v979 = vadd.f32 %v952, %v975
        %v980 = vadd.f32 %v953, %v971
        %v981 = vadd.f32 %v954, %v975
        %v982 = vadd.f32 %v955, %v971
        %v983 = vadd.f32 %v956, %v975
        %v984 = vadd.f32 %v957, %v971
        %v985 = vadd.f32 %v958, %v975
        %v986 = vadd.f32 %v959, %v971
        %v987 = vadd.f32 %v960, %v975
        %v988 = vadd.f32 %v961, %v971
        %v989 = vadd.f32 %v962, %v975
        %v990 = vadd.f32 %v963, %v971
        %v991 = vadd.f32 %v964, %v975
        %v992 = vadd.f32 %v965, %v971
        %v993 = vadd.f32 %v966, %v975
        %v994 = vmax.f32 %v978, 0.0
        %v995 = vmax.f32 %v979, 0.0
        %v996 = vmax.f32 %v980, 0.0
        %v997 = vmax.f32 %v981, 0.0
        %v998 = vmax.f32 %v982, 0.0
        %v999 = vmax.f32 %v983, 0.0
        %v1000 = vmax.f32 %v984, 0.0
        %v1001 = vmax.f32 %v985, 0.0
        %v1002 = vmax.f32 %v986, 0.0
        %v1003 = vmax.f32 %v987, 0.0
        %v1004 = vmax.f32 %v988, 0.0
        %v1005 = vmax.f32 %v989, 0.0
        %v1006 = vmax.f32 %v990, 0.0
        %v1007 = vmax.f32 %v991, 0.0
        %v1008 = vmax.f32 %v992, 0.0
        %v1009 = vmax.f32 %v993, 0.0
        %v1010 = vld [vmem:[#allocation7 + $0xc] sm:$0x1]
        %v1011 = vld [vmem:[#allocation7 + $0xd] sm:$0x1]
        %v1012 = vld [vmem:[#allocation7 + $0xe] sm:$0x1]
        %v1013 = vpack.c.bf16 %v996, %v994
        %v1014 = vpack.c.bf16 %v997, %v995
        %v1015 = vpack.c.bf16 %v1000, %v998
        %v1016 = vpack.c.bf16 %v1001, %v999
        %v1017 = vpack.c.bf16 %v1004, %v1002
        %v1018 = vpack.c.bf16 %v1005, %v1003
        %v1019 = vpack.c.bf16 %v1008, %v1006
        %v1020 = vpack.c.bf16 %v1009, %v1007
        %v1021 = vld [vmem:[#allocation5] sm:$0xf]
        %v1022 = vld [vmem:[#allocation5 + $0x4] sm:$0xf]
        %v1023 = vld [vmem:[#allocation5 + $0x8] sm:$0xf]
        %v1024 = vld [vmem:[#allocation5 + $0xc] sm:$0xf]
        %v1025 = vld [vmem:[#allocation5 + $0x10] sm:$0xf]
        %v1026 = vld [vmem:[#allocation5 + $0x14] sm:$0xf]
        %v1027 = vld [vmem:[#allocation5 + $0x18] sm:$0xf]
        %v1028 = vld [vmem:[#allocation5 + $0x1c] sm:$0xf]
        %v1029 = vld [vmem:[#allocation5 + $0x20] sm:$0xf]
        %v1030 = vld [vmem:[#allocation5 + $0x24] sm:$0xf]
        %v1031 = vld [vmem:[#allocation5 + $0x28] sm:$0xf]
        %v1032 = vld [vmem:[#allocation5 + $0x2c] sm:$0xf]
        %v1033 = vld [vmem:[#allocation5 + $0x30] sm:$0xf]
        %v1034 = vld [vmem:[#allocation5 + $0x34] sm:$0xf]
        %v1035 = vld [vmem:[#allocation5 + $0x38] sm:$0xf]
        %v1036 = vld [vmem:[#allocation5 + $0x3c] sm:$0xf]
        %v1037 = vld [vmem:[#allocation5 + $0x40] sm:$0xf]
        %v1038 = vld [vmem:[#allocation5 + $0x44] sm:$0xf]
        %v1039 = vld [vmem:[#allocation5 + $0x48] sm:$0xf]
        %v1040 = vld [vmem:[#allocation5 + $0x4c] sm:$0xf]
        %v1041 = vld [vmem:[#allocation5 + $0x50] sm:$0xf]
        %v1042 = vld [vmem:[#allocation5 + $0x54] sm:$0xf]
        %v1043 = vld [vmem:[#allocation5 + $0x58] sm:$0xf]
        %v1044 = vld [vmem:[#allocation5 + $0x5c] sm:$0xf]
        %v1045 = vld [vmem:[#allocation5 + $0x60] sm:$0xf]
        %v1046 = vld [vmem:[#allocation5 + $0x64] sm:$0xf]
        %v1047 = vld [vmem:[#allocation5 + $0x68] sm:$0xf]
        %v1048 = vld [vmem:[#allocation5 + $0x6c] sm:$0xf]
        %v1049 = vld [vmem:[#allocation5 + $0x70] sm:$0xf]
        %v1050 = vld [vmem:[#allocation5 + $0x74] sm:$0xf]
        %v1051 = vld [vmem:[#allocation5 + $0x78] sm:$0xf]
        %v1052 = vld [vmem:[#allocation5 + $0x7c] sm:$0xf]
        %v1053 = vlaneseq
        %v1054 = vshrl.u32 %v1053, 7
        %v1055 = vsub.s32 0, %v1054
        %v1056 = vrot.slane %v1010, %v1055
        %v1089 = vunpack.c.l.b16 %v1021
        %v1090 = vunpack.c.l.b16 %v1022
        %v1091 = vunpack.c.l.b16 %v1023
        %v1092 = vunpack.c.l.b16 %v1024
        %v1093 = vunpack.c.l.b16 %v1025
        %v1094 = vunpack.c.l.b16 %v1026
        %v1095 = vunpack.c.l.b16 %v1027
        %v1096 = vunpack.c.l.b16 %v1028
        %v1097 = vunpack.c.l.b16 %v1029
        %v1098 = vunpack.c.l.b16 %v1030
        %v1099 = vunpack.c.l.b16 %v1031
        %v1100 = vunpack.c.l.b16 %v1032
        %v1101 = vunpack.c.l.b16 %v1033
        %v1102 = vunpack.c.l.b16 %v1034
        %v1103 = vunpack.c.l.b16 %v1035
        %v1104 = vunpack.c.l.b16 %v1036
        %v1105 = vunpack.c.l.b16 %v1037
        %v1106 = vunpack.c.l.b16 %v1038
        %v1107 = vunpack.c.l.b16 %v1039
        %v1108 = vunpack.c.l.b16 %v1040
        %v1109 = vunpack.c.l.b16 %v1041
        %v1110 = vunpack.c.l.b16 %v1042
        %v1111 = vunpack.c.l.b16 %v1043
        %v1112 = vunpack.c.l.b16 %v1044
        %v1113 = vunpack.c.l.b16 %v1045
        %v1114 = vunpack.c.l.b16 %v1046
        %v1115 = vunpack.c.l.b16 %v1047
        %v1116 = vunpack.c.l.b16 %v1048
        %v1117 = vunpack.c.l.b16 %v1049
        %v1118 = vunpack.c.l.b16 %v1050
        %v1119 = vunpack.c.l.b16 %v1051
        %v1120 = vunpack.c.l.b16 %v1052
        %v1121 = vpack.c.b16 %v1090, %v1089
        %v1122 = vpack.c.b16 %v1092, %v1091
        %v1123 = vpack.c.b16 %v1094, %v1093
        %v1124 = vpack.c.b16 %v1096, %v1095
        %v1125 = vpack.c.b16 %v1098, %v1097
        %v1126 = vpack.c.b16 %v1100, %v1099
        %v1127 = vpack.c.b16 %v1102, %v1101
        %v1128 = vpack.c.b16 %v1104, %v1103
        %v1129 = vpack.c.b16 %v1106, %v1105
        %v1130 = vpack.c.b16 %v1108, %v1107
        %v1131 = vpack.c.b16 %v1110, %v1109
        %v1132 = vpack.c.b16 %v1112, %v1111
        %v1133 = vpack.c.b16 %v1114, %v1113
        %v1134 = vpack.c.b16 %v1116, %v1115
        %v1135 = vpack.c.b16 %v1118, %v1117
        %v1136 = vpack.c.b16 %v1120, %v1119
        %1153 = vmatprep.subr.bf16.mxu0 0
        %1154 = vmatpush1.bf16.msra.mxu0 %v1121
        %1155 = vmatprep.subr.bf16.mxu0 0
        %1156 = vmatpush1.bf16.msra.mxu0 %v1122
        %1157 = vmatprep.subr.bf16.mxu0 0
        %1158 = vmatpush1.bf16.msra.mxu0 %v1123
        %1159 = vmatprep.subr.bf16.mxu0 0
        %1160 = vmatpush1.bf16.msra.mxu0 %v1124
        %1161 = vmatprep.subr.bf16.mxu0 0
        %1162 = vmatpush1.bf16.msra.mxu0 %v1125
        %1163 = vmatprep.subr.bf16.mxu0 0
        %1164 = vmatpush1.bf16.msra.mxu0 %v1126
        %1165 = vmatprep.subr.bf16.mxu0 0
        %1166 = vmatpush1.bf16.msra.mxu0 %v1127
        %1167 = vmatprep.subr.bf16.mxu0 0
        %1168 = vmatpush1.bf16.msra.mxu0 %v1128
        %1169 = vmatprep.subr.bf16.mxu0 0
        %1170 = vmatpush1.bf16.msra.mxu0 %v1129
        %1171 = vmatprep.subr.bf16.mxu0 0
        %1172 = vmatpush1.bf16.msra.mxu0 %v1130
        %1173 = vmatprep.subr.bf16.mxu0 0
        %1174 = vmatpush1.bf16.msra.mxu0 %v1131
        %1175 = vmatprep.subr.bf16.mxu0 0
        %1176 = vmatpush1.bf16.msra.mxu0 %v1132
        %1177 = vmatprep.subr.bf16.mxu0 0
        %1178 = vmatpush1.bf16.msra.mxu0 %v1133
        %1179 = vmatprep.subr.bf16.mxu0 0
        %1180 = vmatpush1.bf16.msra.mxu0 %v1134
        %1181 = vmatprep.subr.bf16.mxu0 0
        %1182 = vmatpush1.bf16.msra.mxu0 %v1135
        %1183 = vmatprep.subr.bf16.mxu0 0
        %1184 = vmatpush1.bf16.msra.mxu0 %v1136
        %1185 = vmatprep.mubr.bf16.mxu0 %v1014
        %1186 = vmatmul.mubr.bf16.gmra.mrb[0].mxu0 %v1013
        %v1187 = vpop.f32.mrb[0].mxu0
        %v1188 = vadd.f32 %v1056, %v1187
        %v1189 = vpop.f32.mrb[0].mxu0
        %v1190 = vpop.f32.mrb[0].mxu0
        %v1191 = vadd.f32 %v1056, %v1190
        %v1192 = vpop.f32.mrb[0].mxu0
        %1193 = vmatprep.mubr.bf16.mxu0 %v1016
        %1194 = vmatmul.mubr.bf16.gmra.mrb[0].mxu0 %v1015
        %v1195 = vpop.f32.mrb[0].mxu0
        %v1196 = vadd.f32 %v1056, %v1195
        %v1197 = vpop.f32.mrb[0].mxu0
        %v1198 = vpop.f32.mrb[0].mxu0
        %v1199 = vadd.f32 %v1056, %v1198
        %v1200 = vpop.f32.mrb[0].mxu0
        %1201 = vmatprep.mubr.bf16.mxu0 %v1018
        %1202 = vmatmul.mubr.bf16.gmra.mrb[0].mxu0 %v1017
        %v1203 = vpop.f32.mrb[0].mxu0
        %v1204 = vadd.f32 %v1056, %v1203
        %v1205 = vpop.f32.mrb[0].mxu0
        %v1206 = vpop.f32.mrb[0].mxu0
        %v1207 = vadd.f32 %v1056, %v1206
        %v1208 = vpop.f32.mrb[0].mxu0
        %1209 = vmatprep.mubr.bf16.mxu0 %v1020
        %1210 = vmatmul.mubr.bf16.gmra.mrb[0].mxu0 %v1019
        %v1211 = vpop.f32.mrb[0].mxu0
        %v1212 = vadd.f32 %v1056, %v1211
        %v1213 = vpop.f32.mrb[0].mxu0
        %v1214 = vpop.f32.mrb[0].mxu0
        %v1215 = vadd.f32 %v1056, %v1214
        %v1216 = vpop.f32.mrb[0].mxu0
        %1217 = vdwg.mxu0
        %1218 = vadd.xlane.f32.xlu0 %v1188
        %v1219 = vpop.xlane.xlu0 %1218
        %1220 = vadd.xlane.f32.xlu0 %v1191
        %v1221 = vpop.xlane.xlu0 %1220
        %1222 = vadd.xlane.f32.xlu0 %v1196
        %v1223 = vpop.xlane.xlu0 %1222
        %1224 = vadd.xlane.f32.xlu0 %v1199
        %v1225 = vpop.xlane.xlu0 %1224
        %1226 = vadd.xlane.f32.xlu0 %v1204
        %v1227 = vpop.xlane.xlu0 %1226
        %1228 = vadd.xlane.f32.xlu0 %v1207
        %v1229 = vpop.xlane.xlu0 %1228
        %1230 = vadd.xlane.f32.xlu0 %v1212
        %v1231 = vpop.xlane.xlu0 %1230
        %1232 = vadd.xlane.f32.xlu0 %v1215
        %v1233 = vpop.xlane.xlu0 %1232
        %v1234 = vmul.f32 %v1219, %v468
        %v1235 = vmul.f32 %v1221, %v468
        %v1236 = vmul.f32 %v1223, %v468
        %v1237 = vmul.f32 %v1225, %v468
        %v1238 = vmul.f32 %v1227, %v468
        %v1239 = vmul.f32 %v1229, %v468
        %v1240 = vmul.f32 %v1231, %v468
        %v1241 = vmul.f32 %v1233, %v468
        %v1242 = vmul.f32 %v1188, %v1188
        %v1243 = vmul.f32 %v1191, %v1191
        %v1244 = vmul.f32 %v1196, %v1196
        %v1245 = vmul.f32 %v1199, %v1199
        %v1246 = vmul.f32 %v1204, %v1204
        %v1247 = vmul.f32 %v1207, %v1207
        %v1248 = vmul.f32 %v1212, %v1212
        %v1249 = vmul.f32 %v1215, %v1215
        %1250 = vadd.xlane.f32.xlu0 %v1242
        %v1251 = vpop.xlane.xlu0 %1250
        %1252 = vadd.xlane.f32.xlu0 %v1243
        %v1253 = vpop.xlane.xlu0 %1252
        %1254 = vadd.xlane.f32.xlu0 %v1244
        %v1255 = vpop.xlane.xlu0 %1254
        %1256 = vadd.xlane.f32.xlu0 %v1245
        %v1257 = vpop.xlane.xlu0 %1256
        %1258 = vadd.xlane.f32.xlu0 %v1246
        %v1259 = vpop.xlane.xlu0 %1258
        %1260 = vadd.xlane.f32.xlu0 %v1247
        %v1261 = vpop.xlane.xlu0 %1260
        %1262 = vadd.xlane.f32.xlu0 %v1248
        %v1263 = vpop.xlane.xlu0 %1262
        %1264 = vadd.xlane.f32.xlu0 %v1249
        %v1265 = vpop.xlane.xlu0 %1264
        %v1266 = vmul.f32 %v1251, %v468
        %v1267 = vmul.f32 %v1253, %v468
        %v1268 = vmul.f32 %v1255, %v468
        %v1269 = vmul.f32 %v1257, %v468
        %v1270 = vmul.f32 %v1259, %v468
        %v1271 = vmul.f32 %v1261, %v468
        %v1272 = vmul.f32 %v1263, %v468
        %v1273 = vmul.f32 %v1265, %v468
        %v1274 = vmul.f32 %v1234, %v1234
        %v1275 = vmul.f32 %v1235, %v1235
        %v1276 = vmul.f32 %v1236, %v1236
        %v1277 = vmul.f32 %v1237, %v1237
        %v1278 = vmul.f32 %v1238, %v1238
        %v1279 = vmul.f32 %v1239, %v1239
        %v1280 = vmul.f32 %v1240, %v1240
        %v1281 = vmul.f32 %v1241, %v1241
        %v1282 = vsub.f32 %v1266, %v1274
        %v1283 = vsub.f32 %v1267, %v1275
        %v1284 = vsub.f32 %v1268, %v1276
        %v1285 = vsub.f32 %v1269, %v1277
        %v1286 = vsub.f32 %v1270, %v1278
        %v1287 = vsub.f32 %v1271, %v1279
        %v1288 = vsub.f32 %v1272, %v1280
        %v1289 = vsub.f32 %v1273, %v1281
        %v1290 = vmax.f32 %v1282, 0.0
        %v1291 = vmax.f32 %v1283, 0.0
        %v1292 = vmax.f32 %v1284, 0.0
        %v1293 = vmax.f32 %v1285, 0.0
        %v1294 = vmax.f32 %v1286, 0.0
        %v1295 = vmax.f32 %v1287, 0.0
        %v1296 = vmax.f32 %v1288, 0.0
        %v1297 = vmax.f32 %v1289, 0.0
        %v1298 = vsub.f32 %v1188, %v1234
        %v1299 = vsub.f32 %v1191, %v1235
        %v1300 = vsub.f32 %v1196, %v1236
        %v1301 = vsub.f32 %v1199, %v1237
        %v1302 = vsub.f32 %v1204, %v1238
        %v1303 = vsub.f32 %v1207, %v1239
        %v1304 = vsub.f32 %v1212, %v1240
        %v1305 = vsub.f32 %v1215, %v1241
        %v1306 = vadd.f32 %v1290, 1e-05
        %v1307 = vadd.f32 %v1291, 1e-05
        %v1308 = vadd.f32 %v1292, 1e-05
        %v1309 = vadd.f32 %v1293, 1e-05
        %v1310 = vadd.f32 %v1294, 1e-05
        %v1311 = vadd.f32 %v1295, 1e-05
        %v1312 = vadd.f32 %v1296, 1e-05
        %v1313 = vadd.f32 %v1297, 1e-05
        %v1314 = vrsqrt.pop %v1306
        %v1315 = vrsqrt.pop %v1307
        %v1316 = vrsqrt.pop %v1308
        %v1317 = vrsqrt.pop %v1309
        %v1318 = vrsqrt.pop %v1310
        %v1319 = vrsqrt.pop %v1311
        %v1320 = vrsqrt.pop %v1312
        %v1321 = vrsqrt.pop %v1313
        %v1322 = vmul.f32 %v1298, %v1314
        %v1323 = vmul.f32 %v1299, %v1315
        %v1324 = vmul.f32 %v1300, %v1316
        %v1325 = vmul.f32 %v1301, %v1317
        %v1326 = vmul.f32 %v1302, %v1318
        %v1327 = vmul.f32 %v1303, %v1319
        %v1328 = vmul.f32 %v1304, %v1320
        %v1329 = vmul.f32 %v1305, %v1321
        %v1330 = vlaneseq
        %v1331 = vshrl.u32 %v1330, 7
        %v1332 = vsub.s32 0, %v1331
        %v1333 = vrot.slane %v1011, %v1332
        %v1334 = vmul.f32 %v1322, %v1333
        %v1335 = vmul.f32 %v1323, %v1333
        %v1336 = vmul.f32 %v1324, %v1333
        %v1337 = vmul.f32 %v1325, %v1333
        %v1338 = vmul.f32 %v1326, %v1333
        %v1339 = vmul.f32 %v1327, %v1333
        %v1340 = vmul.f32 %v1328, %v1333
        %v1341 = vmul.f32 %v1329, %v1333
        %v1342 = vlaneseq
        %v1343 = vshrl.u32 %v1342, 7
        %v1344 = vsub.s32 0, %v1343
        %v1345 = vrot.slane %v1012, %v1344
        %v1346 = vadd.f32 %v1334, %v1345
        %v1347 = vadd.f32 %v1335, %v1345
        %v1348 = vadd.f32 %v1336, %v1345
        %v1349 = vadd.f32 %v1337, %v1345
        %v1350 = vadd.f32 %v1338, %v1345
        %v1351 = vadd.f32 %v1339, %v1345
        %v1352 = vadd.f32 %v1340, %v1345
        %v1353 = vadd.f32 %v1341, %v1345
        %v1354 = vmax.f32 %v1346, 0.0
        %v1355 = vmax.f32 %v1347, 0.0
        %v1356 = vmax.f32 %v1348, 0.0
        %v1357 = vmax.f32 %v1349, 0.0
        %v1358 = vmax.f32 %v1350, 0.0
        %v1359 = vmax.f32 %v1351, 0.0
        %v1360 = vmax.f32 %v1352, 0.0
        %v1361 = vmax.f32 %v1353, 0.0
        %v1362 = vld [vmem:[#allocation7 + $0x10] sm:$0x1]
        %v1363 = vld [vmem:[#allocation7 + $0x11] sm:$0x1]
        %v1364 = vld [vmem:[#allocation7 + $0x12] sm:$0x1]
        %v1365 = vpack.c.bf16 %v1355, %v1354
        %v1366 = vpack.c.bf16 %v1357, %v1356
        %v1367 = vpack.c.bf16 %v1359, %v1358
        %v1368 = vpack.c.bf16 %v1361, %v1360
        %v1369 = vld [vmem:[%s4] sm:$0xf]
        %v1370 = vld [vmem:[%s4 + $0x4] sm:$0xf]
        %v1371 = vld [vmem:[%s4 + $0x8] sm:$0xf]
        %v1372 = vld [vmem:[%s4 + $0xc] sm:$0xf]
        %v1373 = vld [vmem:[%s4 + $0x10] sm:$0xf]
        %v1374 = vld [vmem:[%s4 + $0x14] sm:$0xf]
        %v1375 = vld [vmem:[%s4 + $0x18] sm:$0xf]
        %v1376 = vld [vmem:[%s4 + $0x1c] sm:$0xf]
        %v1377 = vld [vmem:[%s4 + $0x20] sm:$0xf]
        %v1378 = vld [vmem:[%s4 + $0x24] sm:$0xf]
        %v1379 = vld [vmem:[%s4 + $0x28] sm:$0xf]
        %v1380 = vld [vmem:[%s4 + $0x2c] sm:$0xf]
        %v1381 = vld [vmem:[%s4 + $0x30] sm:$0xf]
        %v1382 = vld [vmem:[%s4 + $0x34] sm:$0xf]
        %v1383 = vld [vmem:[%s4 + $0x38] sm:$0xf]
        %v1384 = vld [vmem:[%s4 + $0x3c] sm:$0xf]
        %v1385 = vlaneseq
        %v1386 = vshrl.u32 %v1385, 7
        %v1387 = vsub.s32 0, %v1386
        %v1388 = vrot.slane %v1362, %v1387
        %v1405 = vunpack.c.l.b16 %v1369
        %v1406 = vunpack.c.l.b16 %v1370
        %v1407 = vunpack.c.l.b16 %v1371
        %v1408 = vunpack.c.l.b16 %v1372
        %v1409 = vunpack.c.l.b16 %v1373
        %v1410 = vunpack.c.l.b16 %v1374
        %v1411 = vunpack.c.l.b16 %v1375
        %v1412 = vunpack.c.l.b16 %v1376
        %v1413 = vunpack.c.l.b16 %v1377
        %v1414 = vunpack.c.l.b16 %v1378
        %v1415 = vunpack.c.l.b16 %v1379
        %v1416 = vunpack.c.l.b16 %v1380
        %v1417 = vunpack.c.l.b16 %v1381
        %v1418 = vunpack.c.l.b16 %v1382
        %v1419 = vunpack.c.l.b16 %v1383
        %v1420 = vunpack.c.l.b16 %v1384
        %v1421 = vpack.c.b16 %v1406, %v1405
        %v1422 = vpack.c.b16 %v1408, %v1407
        %v1423 = vpack.c.b16 %v1410, %v1409
        %v1424 = vpack.c.b16 %v1412, %v1411
        %v1425 = vpack.c.b16 %v1414, %v1413
        %v1426 = vpack.c.b16 %v1416, %v1415
        %v1427 = vpack.c.b16 %v1418, %v1417
        %v1428 = vpack.c.b16 %v1420, %v1419
        %1437 = vmatprep.subr.bf16.mxu0 0
        %1438 = vmatpush1.bf16.msra.mxu0 %v1421
        %1439 = vmatprep.subr.bf16.mxu0 0
        %1440 = vmatpush1.bf16.msra.mxu0 %v1422
        %1441 = vmatprep.subr.bf16.mxu0 0
        %1442 = vmatpush1.bf16.msra.mxu0 %v1423
        %1443 = vmatprep.subr.bf16.mxu0 0
        %1444 = vmatpush1.bf16.msra.mxu0 %v1424
        %1445 = vmatprep.subr.bf16.mxu0 0
        %1446 = vmatpush1.bf16.msra.mxu0 %v1425
        %1447 = vmatprep.subr.bf16.mxu0 0
        %1448 = vmatpush1.bf16.msra.mxu0 %v1426
        %1449 = vmatprep.subr.bf16.mxu0 0
        %1450 = vmatpush1.bf16.msra.mxu0 %v1427
        %1451 = vmatprep.subr.bf16.mxu0 0
        %1452 = vmatpush1.bf16.msra.mxu0 %v1428
        %1453 = vmatprep.subr.bf16.mxu0 0
        %1454 = vmatpush1.bf16.msra.mxu0 0
        %1455 = vmatprep.subr.bf16.mxu0 0
        %1456 = vmatpush1.bf16.msra.mxu0 0
        %1457 = vmatprep.subr.bf16.mxu0 0
        %1458 = vmatpush1.bf16.msra.mxu0 0
        %1459 = vmatprep.subr.bf16.mxu0 0
        %1460 = vmatpush1.bf16.msra.mxu0 0
        %1461 = vmatprep.subr.bf16.mxu0 0
        %1462 = vmatpush1.bf16.msra.mxu0 0
        %1463 = vmatprep.subr.bf16.mxu0 0
        %1464 = vmatpush1.bf16.msra.mxu0 0
        %1465 = vmatprep.subr.bf16.mxu0 0
        %1466 = vmatpush1.bf16.msra.mxu0 0
        %1467 = vmatprep.subr.bf16.mxu0 0
        %1468 = vmatpush1.bf16.msra.mxu0 0
        %1469 = vmatprep.mubr.bf16.mxu0 0
        %1470 = vmatmul.mubr.bf16.gmra.mrb[0].mxu0 %v1365
        %v1471 = vpop.f32.mrb[0].mxu0
        %v1472 = vadd.f32 %v1388, %v1471
        %v1473 = vpop.f32.mrb[0].mxu0
        %v1474 = vpop.f32.mrb[0].mxu0
        %v1475 = vadd.f32 %v1388, %v1474
        %v1476 = vpop.f32.mrb[0].mxu0
        %1477 = vmatprep.mubr.bf16.mxu0 0
        %1478 = vmatmul.mubr.bf16.gmra.mrb[0].mxu0 %v1366
        %v1479 = vpop.f32.mrb[0].mxu0
        %v1480 = vadd.f32 %v1388, %v1479
        %v1481 = vpop.f32.mrb[0].mxu0
        %v1482 = vpop.f32.mrb[0].mxu0
        %v1483 = vadd.f32 %v1388, %v1482
        %v1484 = vpop.f32.mrb[0].mxu0
        %1485 = vmatprep.mubr.bf16.mxu0 0
        %1486 = vmatmul.mubr.bf16.gmra.mrb[0].mxu0 %v1367
        %v1487 = vpop.f32.mrb[0].mxu0
        %v1488 = vadd.f32 %v1388, %v1487
        %v1489 = vpop.f32.mrb[0].mxu0
        %v1490 = vpop.f32.mrb[0].mxu0
        %v1491 = vadd.f32 %v1388, %v1490
        %v1492 = vpop.f32.mrb[0].mxu0
        %1493 = vmatprep.mubr.bf16.mxu0 0
        %1494 = vmatmul.mubr.bf16.gmra.mrb[0].mxu0 %v1368
        %v1495 = vpop.f32.mrb[0].mxu0
        %v1496 = vadd.f32 %v1388, %v1495
        %v1497 = vpop.f32.mrb[0].mxu0
        %v1498 = vpop.f32.mrb[0].mxu0
        %v1499 = vadd.f32 %v1388, %v1498
        %v1500 = vpop.f32.mrb[0].mxu0
        %1501 = vdwg.mxu0
        %vm1502 = vcmask 523264
        %v1503 = vsel %vm1502, %v1472, 0.0
        %1504 = vadd.xlane.f32.xlu0 %v1503
        %v1505 = vpop.xlane.xlu0 %1504
        %v1506 = vsel %vm1502, %v1475, 0.0
        %1507 = vadd.xlane.f32.xlu0 %v1506
        %v1508 = vpop.xlane.xlu0 %1507
        %v1509 = vsel %vm1502, %v1480, 0.0
        %1510 = vadd.xlane.f32.xlu0 %v1509
        %v1511 = vpop.xlane.xlu0 %1510
        %v1512 = vsel %vm1502, %v1483, 0.0
        %1513 = vadd.xlane.f32.xlu0 %v1512
        %v1514 = vpop.xlane.xlu0 %1513
        %v1515 = vsel %vm1502, %v1488, 0.0
        %1516 = vadd.xlane.f32.xlu0 %v1515
        %v1517 = vpop.xlane.xlu0 %1516
        %v1518 = vsel %vm1502, %v1491, 0.0
        %1519 = vadd.xlane.f32.xlu0 %v1518
        %v1520 = vpop.xlane.xlu0 %1519
        %v1521 = vsel %vm1502, %v1496, 0.0
        %1522 = vadd.xlane.f32.xlu0 %v1521
        %v1523 = vpop.xlane.xlu0 %1522
        %v1524 = vsel %vm1502, %v1499, 0.0
        %1525 = vadd.xlane.f32.xlu0 %v1524
        %v1526 = vpop.xlane.xlu0 %1525
        %v1527 = vrcp.pop 64.0
        %v1528 = vmul.f32 %v1505, %v1527
        %v1529 = vmul.f32 %v1508, %v1527
        %v1530 = vmul.f32 %v1511, %v1527
        %v1531 = vmul.f32 %v1514, %v1527
        %v1532 = vmul.f32 %v1517, %v1527
        %v1533 = vmul.f32 %v1520, %v1527
        %v1534 = vmul.f32 %v1523, %v1527
        %v1535 = vmul.f32 %v1526, %v1527
        %v1536 = vmul.f32 %v1472, %v1472
        %v1537 = vmul.f32 %v1475, %v1475
        %v1538 = vmul.f32 %v1480, %v1480
        %v1539 = vmul.f32 %v1483, %v1483
        %v1540 = vmul.f32 %v1488, %v1488
        %v1541 = vmul.f32 %v1491, %v1491
        %v1542 = vmul.f32 %v1496, %v1496
        %v1543 = vmul.f32 %v1499, %v1499
        %v1544 = vsel %vm1502, %v1536, 0.0
        %1545 = vadd.xlane.f32.xlu0 %v1544
        %v1546 = vpop.xlane.xlu0 %1545
        %v1547 = vsel %vm1502, %v1537, 0.0
        %1548 = vadd.xlane.f32.xlu0 %v1547
        %v1549 = vpop.xlane.xlu0 %1548
        %v1550 = vsel %vm1502, %v1538, 0.0
        %1551 = vadd.xlane.f32.xlu0 %v1550
        %v1552 = vpop.xlane.xlu0 %1551
        %v1553 = vsel %vm1502, %v1539, 0.0
        %1554 = vadd.xlane.f32.xlu0 %v1553
        %v1555 = vpop.xlane.xlu0 %1554
        %v1556 = vsel %vm1502, %v1540, 0.0
        %1557 = vadd.xlane.f32.xlu0 %v1556
        %v1558 = vpop.xlane.xlu0 %1557
        %v1559 = vsel %vm1502, %v1541, 0.0
        %1560 = vadd.xlane.f32.xlu0 %v1559
        %v1561 = vpop.xlane.xlu0 %1560
        %v1562 = vsel %vm1502, %v1542, 0.0
        %1563 = vadd.xlane.f32.xlu0 %v1562
        %v1564 = vpop.xlane.xlu0 %1563
        %v1565 = vsel %vm1502, %v1543, 0.0
        %1566 = vadd.xlane.f32.xlu0 %v1565
        %v1567 = vpop.xlane.xlu0 %1566
        %v1568 = vmul.f32 %v1546, %v1527
        %v1569 = vmul.f32 %v1549, %v1527
        %v1570 = vmul.f32 %v1552, %v1527
        %v1571 = vmul.f32 %v1555, %v1527
        %v1572 = vmul.f32 %v1558, %v1527
        %v1573 = vmul.f32 %v1561, %v1527
        %v1574 = vmul.f32 %v1564, %v1527
        %v1575 = vmul.f32 %v1567, %v1527
        %v1576 = vmul.f32 %v1528, %v1528
        %v1577 = vmul.f32 %v1529, %v1529
        %v1578 = vmul.f32 %v1530, %v1530
        %v1579 = vmul.f32 %v1531, %v1531
        %v1580 = vmul.f32 %v1532, %v1532
        %v1581 = vmul.f32 %v1533, %v1533
        %v1582 = vmul.f32 %v1534, %v1534
        %v1583 = vmul.f32 %v1535, %v1535
        %v1584 = vsub.f32 %v1568, %v1576
        %v1585 = vsub.f32 %v1569, %v1577
        %v1586 = vsub.f32 %v1570, %v1578
        %v1587 = vsub.f32 %v1571, %v1579
        %v1588 = vsub.f32 %v1572, %v1580
        %v1589 = vsub.f32 %v1573, %v1581
        %v1590 = vsub.f32 %v1574, %v1582
        %v1591 = vsub.f32 %v1575, %v1583
        %v1592 = vmax.f32 %v1584, 0.0
        %v1593 = vmax.f32 %v1585, 0.0
        %v1594 = vmax.f32 %v1586, 0.0
        %v1595 = vmax.f32 %v1587, 0.0
        %v1596 = vmax.f32 %v1588, 0.0
        %v1597 = vmax.f32 %v1589, 0.0
        %v1598 = vmax.f32 %v1590, 0.0
        %v1599 = vmax.f32 %v1591, 0.0
        %v1600 = vsub.f32 %v1472, %v1528
        %v1601 = vsub.f32 %v1475, %v1529
        %v1602 = vsub.f32 %v1480, %v1530
        %v1603 = vsub.f32 %v1483, %v1531
        %v1604 = vsub.f32 %v1488, %v1532
        %v1605 = vsub.f32 %v1491, %v1533
        %v1606 = vsub.f32 %v1496, %v1534
        %v1607 = vsub.f32 %v1499, %v1535
        %v1608 = vadd.f32 %v1592, 1e-05
        %v1609 = vadd.f32 %v1593, 1e-05
        %v1610 = vadd.f32 %v1594, 1e-05
        %v1611 = vadd.f32 %v1595, 1e-05
        %v1612 = vadd.f32 %v1596, 1e-05
        %v1613 = vadd.f32 %v1597, 1e-05
        %v1614 = vadd.f32 %v1598, 1e-05
        %v1615 = vadd.f32 %v1599, 1e-05
        %v1616 = vrsqrt.pop %v1608
        %v1617 = vrsqrt.pop %v1609
        %v1618 = vrsqrt.pop %v1610
        %v1619 = vrsqrt.pop %v1611
        %v1620 = vrsqrt.pop %v1612
        %v1621 = vrsqrt.pop %v1613
        %v1622 = vrsqrt.pop %v1614
        %v1623 = vrsqrt.pop %v1615
        %v1624 = vmul.f32 %v1600, %v1616
        %v1625 = vmul.f32 %v1601, %v1617
        %v1626 = vmul.f32 %v1602, %v1618
        %v1627 = vmul.f32 %v1603, %v1619
        %v1628 = vmul.f32 %v1604, %v1620
        %v1629 = vmul.f32 %v1605, %v1621
        %v1630 = vmul.f32 %v1606, %v1622
        %v1631 = vmul.f32 %v1607, %v1623
        %v1632 = vlaneseq
        %v1633 = vshrl.u32 %v1632, 7
        %v1634 = vsub.s32 0, %v1633
        %v1635 = vrot.slane %v1363, %v1634
        %v1636 = vmul.f32 %v1624, %v1635
        %v1637 = vmul.f32 %v1625, %v1635
        %v1638 = vmul.f32 %v1626, %v1635
        %v1639 = vmul.f32 %v1627, %v1635
        %v1640 = vmul.f32 %v1628, %v1635
        %v1641 = vmul.f32 %v1629, %v1635
        %v1642 = vmul.f32 %v1630, %v1635
        %v1643 = vmul.f32 %v1631, %v1635
        %v1644 = vlaneseq
        %v1645 = vshrl.u32 %v1644, 7
        %v1646 = vsub.s32 0, %v1645
        %v1647 = vrot.slane %v1364, %v1646
        %v1648 = vadd.f32 %v1636, %v1647
        %v1649 = vadd.f32 %v1637, %v1647
        %v1650 = vadd.f32 %v1638, %v1647
        %v1651 = vadd.f32 %v1639, %v1647
        %v1652 = vadd.f32 %v1640, %v1647
        %v1653 = vadd.f32 %v1641, %v1647
        %v1654 = vadd.f32 %v1642, %v1647
        %v1655 = vadd.f32 %v1643, %v1647
        %v1656 = vmax.f32 %v1648, 0.0
        %v1657 = vmax.f32 %v1649, 0.0
        %v1658 = vmax.f32 %v1650, 0.0
        %v1659 = vmax.f32 %v1651, 0.0
        %v1660 = vmax.f32 %v1652, 0.0
        %v1661 = vmax.f32 %v1653, 0.0
        %v1662 = vmax.f32 %v1654, 0.0
        %v1663 = vmax.f32 %v1655, 0.0
        %v1664 = vld [vmem:[#allocation7 + $0x14] sm:$0x1]
        %v1665 = vpack.c.bf16 %v1657, %v1656
        %v1666 = vpack.c.bf16 %v1659, %v1658
        %v1667 = vpack.c.bf16 %v1661, %v1660
        %v1668 = vpack.c.bf16 %v1663, %v1662
        %v1669 = vld [vmem:[%s5] sm:$0xf]
        %v1670 = vld [vmem:[%s5 + $0x4] sm:$0xf]
        %v1671 = vld [vmem:[%s5 + $0x8] sm:$0xf]
        %v1672 = vld [vmem:[%s5 + $0xc] sm:$0xf]
        %v1673 = vld [vmem:[%s5 + $0x10] sm:$0xf]
        %v1674 = vld [vmem:[%s5 + $0x14] sm:$0xf]
        %v1675 = vld [vmem:[%s5 + $0x18] sm:$0xf]
        %v1676 = vld [vmem:[%s5 + $0x1c] sm:$0xf]
        %v1677 = vlaneseq
        %v1678 = vshrl.u32 %v1677, 7
        %v1679 = vsub.s32 0, %v1678
        %v1680 = vrot.slane %v1664, %v1679
        %v1689 = vunpack.c.l.b16 %v1669
        %v1690 = vunpack.c.l.b16 %v1670
        %v1691 = vunpack.c.l.b16 %v1671
        %v1692 = vunpack.c.l.b16 %v1672
        %v1693 = vunpack.c.l.b16 %v1673
        %v1694 = vunpack.c.l.b16 %v1674
        %v1695 = vunpack.c.l.b16 %v1675
        %v1696 = vunpack.c.l.b16 %v1676
        %v1697 = vpack.c.b16 %v1690, %v1689
        %v1698 = vpack.c.b16 %v1692, %v1691
        %v1699 = vpack.c.b16 %v1694, %v1693
        %v1700 = vpack.c.b16 %v1696, %v1695
        %v1706 = vsel %vm1502, %v1665, 0
        %v1709 = vsel %vm1502, %v1666, 0
        %v1712 = vsel %vm1502, %v1667, 0
        %v1715 = vsel %vm1502, %v1668, 0
        %1717 = vmatprep.subr.bf16.mxu0 0
        %1718 = vmatpush1.bf16.msra.mxu0 %v1697
        %1719 = vmatprep.subr.bf16.mxu0 0
        %1720 = vmatpush1.bf16.msra.mxu0 %v1698
        %1721 = vmatprep.subr.bf16.mxu0 0
        %1722 = vmatpush1.bf16.msra.mxu0 %v1699
        %1723 = vmatprep.subr.bf16.mxu0 0
        %1724 = vmatpush1.bf16.msra.mxu0 %v1700
        %1725 = vmatprep.subr.bf16.mxu0 0
        %1726 = vmatpush1.bf16.msra.mxu0 0
        %1727 = vmatprep.subr.bf16.mxu0 0
        %1728 = vmatpush1.bf16.msra.mxu0 0
        %1729 = vmatprep.subr.bf16.mxu0 0
        %1730 = vmatpush1.bf16.msra.mxu0 0
        %1731 = vmatprep.subr.bf16.mxu0 0
        %1732 = vmatpush1.bf16.msra.mxu0 0
        %1733 = vmatprep.subr.bf16.mxu0 0
        %1734 = vmatpush1.bf16.msra.mxu0 0
        %1735 = vmatprep.subr.bf16.mxu0 0
        %1736 = vmatpush1.bf16.msra.mxu0 0
        %1737 = vmatprep.subr.bf16.mxu0 0
        %1738 = vmatpush1.bf16.msra.mxu0 0
        %1739 = vmatprep.subr.bf16.mxu0 0
        %1740 = vmatpush1.bf16.msra.mxu0 0
        %1741 = vmatprep.subr.bf16.mxu0 0
        %1742 = vmatpush1.bf16.msra.mxu0 0
        %1743 = vmatprep.subr.bf16.mxu0 0
        %1744 = vmatpush1.bf16.msra.mxu0 0
        %1745 = vmatprep.subr.bf16.mxu0 0
        %1746 = vmatpush1.bf16.msra.mxu0 0
        %1747 = vmatprep.subr.bf16.mxu0 0
        %1748 = vmatpush1.bf16.msra.mxu0 0
        %1749 = vmatprep.mubr.bf16.mxu0 0
        %1750 = vmatmul.mubr.bf16.gmra.mrb[0].mxu0 %v1706
        %v1751 = vpop.f32.mrb[0].mxu0
        %v1752 = vadd.f32 %v1680, %v1751
        %v1753 = vpop.f32.mrb[0].mxu0
        %v1754 = vpop.f32.mrb[0].mxu0
        %v1755 = vadd.f32 %v1680, %v1754
        %v1756 = vpop.f32.mrb[0].mxu0
        %1757 = vmatprep.mubr.bf16.mxu0 0
        %1758 = vmatmul.mubr.bf16.gmra.mrb[0].mxu0 %v1709
        %v1759 = vpop.f32.mrb[0].mxu0
        %v1760 = vadd.f32 %v1680, %v1759
        %v1761 = vpop.f32.mrb[0].mxu0
        %v1762 = vpop.f32.mrb[0].mxu0
        %v1763 = vadd.f32 %v1680, %v1762
        %v1764 = vpop.f32.mrb[0].mxu0
        %1765 = vmatprep.mubr.bf16.mxu0 0
        %1766 = vmatmul.mubr.bf16.gmra.mrb[0].mxu0 %v1712
        %v1767 = vpop.f32.mrb[0].mxu0
        %v1768 = vadd.f32 %v1680, %v1767
        %v1769 = vpop.f32.mrb[0].mxu0
        %v1770 = vpop.f32.mrb[0].mxu0
        %v1771 = vadd.f32 %v1680, %v1770
        %v1772 = vpop.f32.mrb[0].mxu0
        %1773 = vmatprep.mubr.bf16.mxu0 0
        %1774 = vmatmul.mubr.bf16.gmra.mrb[0].mxu0 %v1715
        %v1775 = vpop.f32.mrb[0].mxu0
        %v1776 = vadd.f32 %v1680, %v1775
        %v1777 = vpop.f32.mrb[0].mxu0
        %v1778 = vpop.f32.mrb[0].mxu0
        %v1779 = vadd.f32 %v1680, %v1778
        %v1780 = vpop.f32.mrb[0].mxu0
        %1781 = vdwg.mxu0
        %1782 = vst [vmem:[%s314] sm:$0xff] %v1752
        %1783 = vst [vmem:[%s314 + $0x8] sm:$0xff] %v1755
        %1784 = vst [vmem:[%s314 + $0x10] sm:$0xff] %v1760
        %1785 = vst [vmem:[%s314 + $0x18] sm:$0xff] %v1763
        %1786 = vst [vmem:[%s314 + $0x20] sm:$0xff] %v1768
        %1787 = vst [vmem:[%s314 + $0x28] sm:$0xff] %v1771
        %1788 = vst [vmem:[%s314 + $0x30] sm:$0xff] %v1776
        %1789 = vst [vmem:[%s314 + $0x38] sm:$0xff] %v1779
        %s1790 = sand.u32 %s183, 1
        %s1791 = scalar_lea.sflag [#allocation4], %s1790
        %s1792 = sand.u32 %s183, 1
        %s1793 = smul.addr %s1792, 64
        %s1794 = scalar_lea.vmem [#allocation8], %s1793
        // Predicated region
        $region61: #{tpu_custom_call.1} parent=47 // pred_check
          %p1795 = pneg %p193
        $region62: #{tpu_custom_call.1} parent=47 // pred_check_branch
          %1797 = sbr.rel (%p1795) target = $region64
        $region63: #{tpu_custom_call.1} parent=47 // pred_region
          %s1798 = smul.u32 8, %s23
          %s1800 = ssub.s32 1024, 1024
          %1801 = vsyncadd %s1791, %s1800
          %s1802 = smul.addr %s1798, 128
          %s1803 = scalar_lea.hbm %s7, %s1802
          %s1804 = sshll.u32 %s1794, 4
          %s1805 = int_to_ptr.vmem [resolvable:$true] %s1804
          %1810 = dma.vmem_to_hbm [thread:$0]  %s1805, 1024, %s1803, %s1791, 128, 128, 8
        $region64: #{tpu_custom_call.1} parent=47 // pred_fallthru
          _
      $region48: #{tpu_custom_call.1} parent=5 // pred_fallthru
        _
      %p1811 = scmp.le.s32.totalorder 2, %s18
      // Predicated region
      $region65: #{tpu_custom_call.1} parent=5 // pred_check
        %p1812 = pneg %p1811
      $region66: #{tpu_custom_call.1} parent=5 // pred_check_branch
        %1814 = sbr.rel (%p1812) target = $region68
      $region67: #{tpu_custom_call.1} parent=5 // pred_region
        %s1815 = ssub.s32 %s18, 2
        // Predicated region
        $region69: #{tpu_custom_call.1} parent=67 // pred_check
          %p1816 = pneg %p199
        $region70: #{tpu_custom_call.1} parent=67 // pred_check_branch
          %1818 = sbr.rel (%p1816) target = $region72
        $region71: #{tpu_custom_call.1} parent=67 // pred_region
          %s1819 = sand.u32 %s184, 1
          %s1820 = scalar_lea.sflag [#allocation4], %s1819
          %s1821 = sand.u32 %s184, 1
          %s1822 = smul.addr %s1821, 64
          %s1823 = scalar_lea.vmem [#allocation8], %s1822
          %1824 = dma.done %s1820, 1024
        $region72: #{tpu_custom_call.1} parent=67 // pred_fallthru
          _
      $region68: #{tpu_custom_call.1} parent=5 // pred_fallthru
        _
    $region6: #{tpu_custom_call.1} parent=1 // loop_footer
      %s22 = sadd.s32 1, %s18
    $region7: #{tpu_custom_call.1} parent=1 // loop_footer_branch
      %17 = sbr.rel target = $region3
    $region8: #{tpu_custom_call.1} parent=1 // loop_exit
      _
    %1825 = vsyncpa [#allocation3], 1
    %s1826 = scalar_lea.sflag [#allocation3], 1
    %1827 = vsyncpa %s1826, 1
    %1828 = vsyncpa [#allocation6], 1
    %1829 = vsyncpa [#allocation4], 1
    %s1830 = scalar_lea.sflag [#allocation4], 1
    %1831 = vsyncpa %s1830, 1

</llo_original>
